<compile_context>
chip_gen: v7x
topology: tpu7x:2x2x1
jax: 0.10.0
libtpu: 0.0.40
codegen_flags: <defaults>
</compile_context>

<pallas_src>
import functools

import jax
import jax.numpy as jnp
from jax.experimental import pallas as pl
from jax.experimental.pallas import tpu as pltpu

LANE = 128


# ----------------------------------------------------------------------------
# Pallas kernel: a chain of fused  y = relu?(x @ w + b)  layers, all in VMEM.
# ----------------------------------------------------------------------------
def _mlp_kernel(*refs, relu_flags):
    x_ref, o_ref = refs[0], refs[-1]
    x = x_ref[...]
    for i, relu in enumerate(relu_flags):
        w_ref = refs[1 + 2 * i]
        b_ref = refs[2 + 2 * i]
        # bf16 operands, f32 accumulation on the MXU.
        y = jnp.dot(x.astype(w_ref.dtype), w_ref[...],
                    preferred_element_type=jnp.float32)
        y = y + b_ref[...]              # bias in f32
        if relu:
            y = jnp.maximum(y, 0.0)     # ReLU in f32 (VPU)
        x = y
    o_ref[...] = x.astype(o_ref.dtype)


def pallas_mlp(x, layers, out_dtype):
    """x: (M, K).  layers: sequence of (w:(K,N) bf16, b:(1,N) f32, relu:bool)."""
    operands = [x]
    relu_flags = []
    for w, b, relu in layers:
        operands += [w, b]
        relu_flags.append(relu)
    M = x.shape[0]
    N = layers[-1][0].shape[1]
    vmem = pl.BlockSpec(memory_space=pltpu.MemorySpace.VMEM)
    return pl.pallas_call(
        functools.partial(_mlp_kernel, relu_flags=tuple(relu_flags)),
        in_specs=[pl.BlockSpec(memory_space=pltpu.MemorySpace.VMEM)
                  for _ in operands],
        out_specs=vmem,
        out_shape=jax.ShapeDtypeStruct((M, N), out_dtype),
    )(*operands)


# ----------------------------------------------------------------------------
# Slice-based im2col on NHWC (no gathers, no per-layer NCHW transposes).
# Patch feature order is (kh, kw, C); weights are pre-permuted to match.
# ----------------------------------------------------------------------------
def _im2col_nhwc(x, kh, kw, stride):
    B, H, W, C = x.shape
    OH = (H - kh) // stride + 1
    OW = (W - kw) // stride + 1
    cols = []
    for dh in range(kh):
        for dw in range(kw):
            sl = jax.lax.slice(
                x,
                (0, dh, dw, 0),
                (B, dh + stride * (OH - 1) + 1, dw + stride * (OW - 1) + 1, C),
                (1, stride, stride, 1))
            cols.append(sl)                          # (B, OH, OW, C)
    patches = jnp.stack(cols, axis=3)                # (B, OH, OW, kh*kw, C)
    return patches.reshape(B * OH * OW, kh * kw * C), (B, OH, OW)


# ----------------------------------------------------------------------------
# Parameters: PyTorch layout init  ->  kernel-friendly prepared layout.
# ----------------------------------------------------------------------------
def _conv_out(h, k, s):
    return (h - k) // s + 1


def _pad_to(n, m):
    return ((n + m - 1) // m) * m


def init_params(key, input_shape, n_actions):
    """Deterministic synthetic params in *PyTorch* layouts (not a checkpoint)."""
    C, H, W = input_shape
    h1, w1 = _conv_out(H, 8, 4), _conv_out(W, 8, 4)
    h2, w2 = _conv_out(h1, 4, 2), _conv_out(w1, 4, 2)
    h3, w3 = _conv_out(h2, 3, 1), _conv_out(w2, 3, 1)
    flat = 64 * h3 * w3
    ks = jax.random.split(key, 12)
    s = 0.05
    params = {
        "conv1_w": jax.random.normal(ks[0], (32, C, 8, 8), jnp.float32) * s,
        "conv1_b": jax.random.normal(ks[1], (32,), jnp.float32) * s,
        "conv2_w": jax.random.normal(ks[2], (64, 32, 4, 4), jnp.float32) * s,
        "conv2_b": jax.random.normal(ks[3], (64,), jnp.float32) * s,
        "conv3_w": jax.random.normal(ks[4], (64, 64, 3, 3), jnp.float32) * s,
        "conv3_b": jax.random.normal(ks[5], (64,), jnp.float32) * s,
        "shared_w": jax.random.normal(ks[6], (512, flat), jnp.float32) * s,
        "shared_b": jax.random.normal(ks[7], (512,), jnp.float32) * s,
        "actor_w": jax.random.normal(ks[8], (n_actions, 512), jnp.float32) * s,
        "actor_b": jax.random.normal(ks[9], (n_actions,), jnp.float32) * s,
        "critic_w": jax.random.normal(ks[10], (1, 512), jnp.float32) * s,
        "critic_b": jax.random.normal(ks[11], (1,), jnp.float32) * s,
    }
    return params, flat


def prepare_params(params, input_shape, n_actions):
    """PyTorch layouts -> bf16, lane-padded, (kh,kw,Cin)-ordered kernel params.

    Folds the /255 input scaling into conv1_w and the NCHW flatten order into
    shared_w so no runtime scaling / permutation is needed.
    """
    C, H, W = input_shape
    h1, w1 = _conv_out(H, 8, 4), _conv_out(W, 8, 4)
    h2, w2 = _conv_out(h1, 4, 2), _conv_out(w1, 4, 2)
    h3, w3 = _conv_out(h2, 3, 1), _conv_out(w2, 3, 1)
    cpad = LANE  # padded conv channel width (lane-dense outputs)

    def conv_wb(w, b, cin_pad, cout_pad, scale=1.0):
        cout, cin, kh, kw = w.shape
        wk = jnp.transpose(w * scale, (2, 3, 1, 0))              # (kh,kw,cin,cout)
        wk = jnp.pad(wk, ((0, 0), (0, 0),
                          (0, cin_pad - cin), (0, cout_pad - cout)))
        wk = wk.reshape(kh * kw * cin_pad, cout_pad).astype(jnp.bfloat16)
        bk = jnp.pad(b, (0, cout_pad - cout)).reshape(1, cout_pad)
        return wk, bk.astype(jnp.float32)

    w1k, b1k = conv_wb(params["conv1_w"], params["conv1_b"], C, cpad,
                       scale=1.0 / 255.0)                        # fold /255
    w2k, b2k = conv_wb(params["conv2_w"], params["conv2_b"], cpad, cpad)
    w3k, b3k = conv_wb(params["conv3_w"], params["conv3_b"], cpad, cpad)

    # shared: torch (512, 64*h3*w3) with columns in (c, h, w) order ->
    # kernel rows in (h, w, c_padded) order (matches NHWC flatten).
    ws = params["shared_w"].reshape(512, 64, h3, w3)
    ws = jnp.transpose(ws, (2, 3, 1, 0))                         # (h3,w3,64,512)
    ws = jnp.pad(ws, ((0, 0), (0, 0), (0, cpad - 64), (0, 0)))
    ws = ws.reshape(h3 * w3 * cpad, 512).astype(jnp.bfloat16)
    bs = params["shared_b"].reshape(1, 512).astype(jnp.float32)

    # actor + critic fused into one lane-padded head matmul.
    head_n = n_actions + 1
    head_pad = _pad_to(head_n, LANE)
    wh = jnp.concatenate([params["actor_w"], params["critic_w"]], axis=0).T
    wh = jnp.pad(wh, ((0, 0), (0, head_pad - head_n))).astype(jnp.bfloat16)
    bh = jnp.concatenate([params["actor_b"], params["critic_b"]])
    bh = jnp.pad(bh, (0, head_pad - head_n)).reshape(1, head_pad)
    bh = bh.astype(jnp.float32)

    return {"w1": w1k, "b1": b1k, "w2": w2k, "b2": b2k, "w3": w3k, "b3": b3k,
            "ws": ws, "bs": bs, "wh": wh, "bh": bh}


# ----------------------------------------------------------------------------
# Forward pass (mirrors ActorCritic.forward)
# ----------------------------------------------------------------------------
def actor_critic_forward(state, kp, n_actions):
    # state: (B, C, H, W).  /255 is folded into conv1_w; cast once to bf16 NHWC.
    x = jnp.transpose(state.astype(jnp.float32), (0, 2, 3, 1)).astype(jnp.bfloat16)

    cols1, (B, oh1, ow1) = _im2col_nhwc(x, 8, 8, 4)
    a1 = pallas_mlp(cols1, [(kp["w1"], kp["b1"], True)], jnp.bfloat16)
    a1 = a1.reshape(B, oh1, ow1, a1.shape[-1])

    cols2, (_, oh2, ow2) = _im2col_nhwc(a1, 4, 4, 2)
    a2 = pallas_mlp(cols2, [(kp["w2"], kp["b2"], True)], jnp.bfloat16)
    a2 = a2.reshape(B, oh2, ow2, a2.shape[-1])

    cols3, (_, oh3, ow3) = _im2col_nhwc(a2, 3, 3, 1)
    tail = [(kp["w3"], kp["b3"], True),
            (kp["ws"], kp["bs"], True),
            (kp["wh"], kp["bh"], False)]
    if oh3 * ow3 == 1:
        # conv3 output is 1x1 spatially -> its rows are already the flattened
        # features; fuse conv3 + shared + heads into ONE kernel, all in VMEM.
        out = pallas_mlp(cols3, tail, jnp.float32)
    else:
        a3 = pallas_mlp(cols3, tail[:1], jnp.bfloat16)
        a3 = a3.reshape(B, oh3 * ow3 * a3.shape[-1])     # (h, w, c_pad) flatten
        out = pallas_mlp(a3, tail[1:], jnp.float32)

    actor_pi = out[:, :n_actions]
    critic_value = out[:, n_actions:n_actions + 1]
    return actor_pi, critic_value


# ----------------------------------------------------------------------------
# Pure-JAX f32 reference with PyTorch semantics (validation glue only).
# ----------------------------------------------------------------------------
def reference_forward(state, params):
    x = state.astype(jnp.float32) / 255.0

    def conv(x, w, b, stride):
        y = jax.lax.conv_general_dilated(
            x, w, (stride, stride), "VALID",
            dimension_numbers=("NCHW", "OIHW", "NCHW"))
        return jax.nn.relu(y + b[None, :, None, None])

    x = conv(x, params["conv1_w"], params["conv1_b"], 4)
    x = conv(x, params["conv2_w"], params["conv2_b"], 2)
    x = conv(x, params["conv3_w"], params["conv3_b"], 1)
    flat = x.reshape(x.shape[0], -1)                       # NCHW flatten
    shared = jax.nn.relu(flat @ params["shared_w"].T + params["shared_b"])
    actor = shared @ params["actor_w"].T + params["actor_b"]
    critic = shared @ params["critic_w"].T + params["critic_b"]
    return actor, critic


# ----------------------------------------------------------------------------
if __name__ == "__main__":
    key = jax.random.PRNGKey(0)
    k_state, k_params = jax.random.split(key)

    # 4 stacked frames; 36x36 is the smallest spatial size surviving the
    # (8,4)->(4,2)->(3,1) conv stack (conv3 output 1x1); batch 2.
    batch, n_actions = 2, 7
    input_shape = (4, 36, 36)

    params, flat_size = init_params(k_params, input_shape, n_actions)
    kparams = prepare_params(params, input_shape, n_actions)

    state = jax.random.uniform(
        k_state, (batch, *input_shape), jnp.float32, minval=0.0, maxval=255.0)

    fwd = jax.jit(functools.partial(actor_critic_forward, n_actions=n_actions))
    actor_pi, critic_value = fwd(state, kparams)
    jax.block_until_ready((actor_pi, critic_value))

    assert actor_pi.shape == (batch, n_actions), actor_pi.shape
    assert critic_value.shape == (batch, 1), critic_value.shape

    # Validate against the f32 PyTorch-semantics reference (bf16 matmul
    # operands + folded scaling -> small, bounded deviation).
    ref_a, ref_c = reference_forward(state, params)
    err = max(float(jnp.max(jnp.abs(actor_pi - ref_a))),
              float(jnp.max(jnp.abs(critic_value - ref_c))))
    assert err < 0.15, f"mismatch vs reference: {err}"

    print("KERNEL_OK")
</pallas_src>

<mosaic_0001>
module attributes {stable_mosaic.version = 11 : i64} {
  func.func @_mlp_kernel(%arg0: memref<128x256xbf16, #tpu.memory_space<vmem>>, %arg1: memref<256x128xbf16, #tpu.memory_space<vmem>>, %arg2: memref<1x128xf32, #tpu.memory_space<vmem>>, %arg3: memref<128x128xbf16, #tpu.memory_space<vmem>>) attributes {dimension_semantics = [], scalar_prefetch = 0 : i64, scratch_operands = 0 : i64, tpu.core_type = #tpu.core_type<tc>} {
    %c0 = arith.constant 0 : index
    %c0_0 = arith.constant 0 : index
    %0 = vector.load %arg0[%c0, %c0_0] : memref<128x256xbf16, #tpu.memory_space<vmem>>, vector<128x256xbf16>
    %c0_1 = arith.constant 0 : index
    %c0_2 = arith.constant 0 : index
    %1 = vector.load %arg1[%c0_1, %c0_2] : memref<256x128xbf16, #tpu.memory_space<vmem>>, vector<256x128xbf16>
    %cst = arith.constant dense<0.000000e+00> : vector<128x128xf32>
    %2 = tpu.matmul %0, %1, %cst {dimension_numbers = #tpu.dot_dimension_numbers<[1], [0], [0], [1], [0, 0, 1, 1], [], []>} : vector<128x256xbf16>, vector<256x128xbf16>, vector<128x128xf32> -> vector<128x128xf32>
    %c0_3 = arith.constant 0 : index
    %c0_4 = arith.constant 0 : index
    %3 = vector.load %arg2[%c0_3, %c0_4] : memref<1x128xf32, #tpu.memory_space<vmem>>, vector<1x128xf32>
    %4 = vector.broadcast %3 : vector<1x128xf32> to vector<128x128xf32>
    %5 = arith.addf %2, %4 : vector<128x128xf32>
    %cst_5 = arith.constant 0.000000e+00 : f32
    %6 = vector.broadcast %cst_5 : f32 to vector<128x128xf32>
    %7 = arith.maximumf %5, %6 : vector<128x128xf32>
    %8 = arith.truncf %7 : vector<128x128xf32> to vector<128x128xbf16>
    %c0_6 = arith.constant 0 : index
    %c0_7 = arith.constant 0 : index
    %9 = vector.load %arg3[%c0_6, %c0_7] : memref<128x128xbf16, #tpu.memory_space<vmem>>, vector<128x128xbf16>
    tpu.vector_store %arg3[%c0_6, %c0_7], %8 {strides = array<i32>} : memref<128x128xbf16, #tpu.memory_space<vmem>>, vector<128x128xbf16>,
    return
  }
}

module attributes {stable_mosaic.version = 11 : i64} {
  func.func @_mlp_kernel(%arg0: memref<18x2048xbf16, #tpu.memory_space<vmem>>, %arg1: memref<2048x128xbf16, #tpu.memory_space<vmem>>, %arg2: memref<1x128xf32, #tpu.memory_space<vmem>>, %arg3: memref<18x128xbf16, #tpu.memory_space<vmem>>) attributes {dimension_semantics = [], scalar_prefetch = 0 : i64, scratch_operands = 0 : i64, tpu.core_type = #tpu.core_type<tc>} {
    %c0 = arith.constant 0 : index
    %c0_0 = arith.constant 0 : index
    %0 = vector.load %arg0[%c0, %c0_0] : memref<18x2048xbf16, #tpu.memory_space<vmem>>, vector<18x2048xbf16>
    %c0_1 = arith.constant 0 : index
    %c0_2 = arith.constant 0 : index
    %1 = vector.load %arg1[%c0_1, %c0_2] : memref<2048x128xbf16, #tpu.memory_space<vmem>>, vector<2048x128xbf16>
    %cst = arith.constant dense<0.000000e+00> : vector<18x128xf32>
    %2 = tpu.matmul %0, %1, %cst {dimension_numbers = #tpu.dot_dimension_numbers<[1], [0], [0], [1], [0, 0, 1, 1], [], []>} : vector<18x2048xbf16>, vector<2048x128xbf16>, vector<18x128xf32> -> vector<18x128xf32>
    %c0_3 = arith.constant 0 : index
    %c0_4 = arith.constant 0 : index
    %3 = vector.load %arg2[%c0_3, %c0_4] : memref<1x128xf32, #tpu.memory_space<vmem>>, vector<1x128xf32>
    %4 = vector.broadcast %3 : vector<1x128xf32> to vector<18x128xf32>
    %5 = arith.addf %2, %4 : vector<18x128xf32>
    %cst_5 = arith.constant 0.000000e+00 : f32
    %6 = vector.broadcast %cst_5 : f32 to vector<18x128xf32>
    %7 = arith.maximumf %5, %6 : vector<18x128xf32>
    %8 = arith.truncf %7 : vector<18x128xf32> to vector<18x128xbf16>
    %c0_6 = arith.constant 0 : index
    %c0_7 = arith.constant 0 : index
    %9 = vector.load %arg3[%c0_6, %c0_7] : memref<18x128xbf16, #tpu.memory_space<vmem>>, vector<18x128xbf16>
    tpu.vector_store %arg3[%c0_6, %c0_7], %8 {strides = array<i32>} : memref<18x128xbf16, #tpu.memory_space<vmem>>, vector<18x128xbf16>,
    return
  }
}

module attributes {stable_mosaic.version = 11 : i64} {
  func.func @_mlp_kernel(%arg0: memref<2x1152xbf16, #tpu.memory_space<vmem>>, %arg1: memref<1152x128xbf16, #tpu.memory_space<vmem>>, %arg2: memref<1x128xf32, #tpu.memory_space<vmem>>, %arg3: memref<128x512xbf16, #tpu.memory_space<vmem>>, %arg4: memref<1x512xf32, #tpu.memory_space<vmem>>, %arg5: memref<512x128xbf16, #tpu.memory_space<vmem>>, %arg6: memref<1x128xf32, #tpu.memory_space<vmem>>, %arg7: memref<2x128xf32, #tpu.memory_space<vmem>>) attributes {dimension_semantics = [], scalar_prefetch = 0 : i64, scratch_operands = 0 : i64, tpu.core_type = #tpu.core_type<tc>} {
    %c0 = arith.constant 0 : index
    %c0_0 = arith.constant 0 : index
    %0 = vector.load %arg0[%c0, %c0_0] : memref<2x1152xbf16, #tpu.memory_space<vmem>>, vector<2x1152xbf16>
    %c0_1 = arith.constant 0 : index
    %c0_2 = arith.constant 0 : index
    %1 = vector.load %arg1[%c0_1, %c0_2] : memref<1152x128xbf16, #tpu.memory_space<vmem>>, vector<1152x128xbf16>
    %cst = arith.constant dense<0.000000e+00> : vector<2x128xf32>
    %2 = tpu.matmul %0, %1, %cst {dimension_numbers = #tpu.dot_dimension_numbers<[1], [0], [0], [1], [0, 0, 1, 1], [], []>} : vector<2x1152xbf16>, vector<1152x128xbf16>, vector<2x128xf32> -> vector<2x128xf32>
    %c0_3 = arith.constant 0 : index
    %c0_4 = arith.constant 0 : index
    %3 = vector.load %arg2[%c0_3, %c0_4] : memref<1x128xf32, #tpu.memory_space<vmem>>, vector<1x128xf32>
    %4 = vector.broadcast %3 : vector<1x128xf32> to vector<2x128xf32>
    %5 = arith.addf %2, %4 : vector<2x128xf32>
    %cst_5 = arith.constant 0.000000e+00 : f32
    %6 = vector.broadcast %cst_5 : f32 to vector<2x128xf32>
    %7 = arith.maximumf %5, %6 : vector<2x128xf32>
    %8 = arith.truncf %7 : vector<2x128xf32> to vector<2x128xbf16>
    %c0_6 = arith.constant 0 : index
    %c0_7 = arith.constant 0 : index
    %9 = vector.load %arg3[%c0_6, %c0_7] : memref<128x512xbf16, #tpu.memory_space<vmem>>, vector<128x512xbf16>
    %cst_8 = arith.constant dense<0.000000e+00> : vector<2x512xf32>
    %10 = tpu.matmul %8, %9, %cst_8 {dimension_numbers = #tpu.dot_dimension_numbers<[1], [0], [0], [1], [0, 0, 1, 1], [], []>} : vector<2x128xbf16>, vector<128x512xbf16>, vector<2x512xf32> -> vector<2x512xf32>
    %c0_9 = arith.constant 0 : index
    %c0_10 = arith.constant 0 : index
    %11 = vector.load %arg4[%c0_9, %c0_10] : memref<1x512xf32, #tpu.memory_space<vmem>>, vector<1x512xf32>
    %12 = vector.broadcast %11 : vector<1x512xf32> to vector<2x512xf32>
    %13 = arith.addf %10, %12 : vector<2x512xf32>
    %cst_11 = arith.constant 0.000000e+00 : f32
    %14 = vector.broadcast %cst_11 : f32 to vector<2x512xf32>
    %15 = arith.maximumf %13, %14 : vector<2x512xf32>
    %16 = arith.truncf %15 : vector<2x512xf32> to vector<2x512xbf16>
    %c0_12 = arith.constant 0 : index
    %c0_13 = arith.constant 0 : index
    %17 = vector.load %arg5[%c0_12, %c0_13] : memref<512x128xbf16, #tpu.memory_space<vmem>>, vector<512x128xbf16>
    %cst_14 = arith.constant dense<0.000000e+00> : vector<2x128xf32>
    %18 = tpu.matmul %16, %17, %cst_14 {dimension_numbers = #tpu.dot_dimension_numbers<[1], [0], [0], [1], [0, 0, 1, 1], [], []>} : vector<2x512xbf16>, vector<512x128xbf16>, vector<2x128xf32> -> vector<2x128xf32>
    %c0_15 = arith.constant 0 : index
    %c0_16 = arith.constant 0 : index
    %19 = vector.load %arg6[%c0_15, %c0_16] : memref<1x128xf32, #tpu.memory_space<vmem>>, vector<1x128xf32>
    %20 = vector.broadcast %19 : vector<1x128xf32> to vector<2x128xf32>
    %21 = arith.addf %18, %20 : vector<2x128xf32>
    %c0_17 = arith.constant 0 : index
    %c0_18 = arith.constant 0 : index
    %22 = vector.load %arg7[%c0_17, %c0_18] : memref<2x128xf32, #tpu.memory_space<vmem>>, vector<2x128xf32>
    tpu.vector_store %arg7[%c0_17, %c0_18], %21 {strides = array<i32>} : memref<2x128xf32, #tpu.memory_space<vmem>>, vector<2x128xf32>,
    return
  }
}

</mosaic_0001>

<llo_original>
// kernel: actor_critic_forward.3
$region0: #{actor_critic_forward.3}
  #allocation0 [shape = 'u32[]', space=smem, size = 0x4, offset = 0x4, fixed_abs, tag = 'smem constant byte address 0x4 - core index']
  #allocation1 [shape = 'u32[144,128]{1,0:T(1,128)}', space=vmem, size = 0x12000, scoped, tag = 'internal scratch']
  %s0 = inlined_call_operand.vmem [shape: bf16[128,256], index: 0, kind: input, shape index: {}]
  %s1 = inlined_call_operand.vmem [shape: bf16[256,128], index: 1, kind: input, shape index: {}]
  %s2 = inlined_call_operand.vmem [shape: f32[1,128], index: 2, kind: input, shape index: {}]
  %s3 = inlined_call_operand.vmem [shape: bf16[128,128], index: 3, kind: output, shape index: {}]
  %s4 = sld [smem:[#allocation0]]
  $region22: #{actor_critic_forward.3} parent=0
    _
  %s6 = ssub.s32 1, %s4
  %s7 = scalar_select 0, %s6, %s4
  // Predicated region
  $region2: #{actor_critic_forward.3} parent=0 // pred_check
    _
  $region3: #{actor_critic_forward.3} parent=0 // pred_check_branch
    %9 = sbr.rel (0) target = $region5
  $region4: #{actor_critic_forward.3} parent=0 // pred_region
    _
  $region5: #{actor_critic_forward.3} parent=0 // pred_fallthru
    _
  // Predicated region
  $region6: #{actor_critic_forward.3} parent=0 // pred_check
    _
  $region7: #{actor_critic_forward.3} parent=0 // pred_check_branch
    %11 = sbr.rel (0) target = $region9
  $region8: #{actor_critic_forward.3} parent=0 // pred_region
    _
  $region9: #{actor_critic_forward.3} parent=0 // pred_fallthru
    _
  // Predicated region
  $region10: #{actor_critic_forward.3} parent=0 // pred_check
    _
  $region11: #{actor_critic_forward.3} parent=0 // pred_check_branch
    %13 = sbr.rel (0) target = $region13
  $region12: #{actor_critic_forward.3} parent=0 // pred_region
    _
  $region13: #{actor_critic_forward.3} parent=0 // pred_fallthru
    _
  %v15 = vld [vmem:[%s0] sm:$0xff]
  %v16 = vld [vmem:[%s0 + $0x8] sm:$0xff]
  %v17 = vld [vmem:[%s0 + $0x10] sm:$0xff]
  %v18 = vld [vmem:[%s0 + $0x18] sm:$0xff]
  %v19 = vld [vmem:[%s0 + $0x20] sm:$0xff]
  %v20 = vld [vmem:[%s0 + $0x28] sm:$0xff]
  %v21 = vld [vmem:[%s0 + $0x30] sm:$0xff]
  %v22 = vld [vmem:[%s0 + $0x38] sm:$0xff]
  %v23 = vld [vmem:[%s0 + $0x40] sm:$0xff]
  %v24 = vld [vmem:[%s0 + $0x48] sm:$0xff]
  %v25 = vld [vmem:[%s0 + $0x50] sm:$0xff]
  %v26 = vld [vmem:[%s0 + $0x58] sm:$0xff]
  %v27 = vld [vmem:[%s0 + $0x60] sm:$0xff]
  %v28 = vld [vmem:[%s0 + $0x68] sm:$0xff]
  %v29 = vld [vmem:[%s0 + $0x70] sm:$0xff]
  %v30 = vld [vmem:[%s0 + $0x78] sm:$0xff]
  %v31 = vld [vmem:[%s1] sm:$0xf]
  %v32 = vld [vmem:[%s1 + $0x4] sm:$0xf]
  %v33 = vld [vmem:[%s1 + $0x8] sm:$0xf]
  %v34 = vld [vmem:[%s1 + $0xc] sm:$0xf]
  %v35 = vld [vmem:[%s1 + $0x10] sm:$0xf]
  %v36 = vld [vmem:[%s1 + $0x14] sm:$0xf]
  %v37 = vld [vmem:[%s1 + $0x18] sm:$0xf]
  %v38 = vld [vmem:[%s1 + $0x1c] sm:$0xf]
  %v39 = vld [vmem:[%s1 + $0x20] sm:$0xf]
  %v40 = vld [vmem:[%s1 + $0x24] sm:$0xf]
  %v41 = vld [vmem:[%s1 + $0x28] sm:$0xf]
  %v42 = vld [vmem:[%s1 + $0x2c] sm:$0xf]
  %v43 = vld [vmem:[%s1 + $0x30] sm:$0xf]
  %v44 = vld [vmem:[%s1 + $0x34] sm:$0xf]
  %v45 = vld [vmem:[%s1 + $0x38] sm:$0xf]
  %v46 = vld [vmem:[%s1 + $0x3c] sm:$0xf]
  %v47 = vld [vmem:[%s1 + $0x40] sm:$0xf]
  %v48 = vld [vmem:[%s1 + $0x44] sm:$0xf]
  %v49 = vld [vmem:[%s1 + $0x48] sm:$0xf]
  %v50 = vld [vmem:[%s1 + $0x4c] sm:$0xf]
  %v51 = vld [vmem:[%s1 + $0x50] sm:$0xf]
  %v52 = vld [vmem:[%s1 + $0x54] sm:$0xf]
  %v53 = vld [vmem:[%s1 + $0x58] sm:$0xf]
  %v54 = vld [vmem:[%s1 + $0x5c] sm:$0xf]
  %v55 = vld [vmem:[%s1 + $0x60] sm:$0xf]
  %v56 = vld [vmem:[%s1 + $0x64] sm:$0xf]
  %v57 = vld [vmem:[%s1 + $0x68] sm:$0xf]
  %v58 = vld [vmem:[%s1 + $0x6c] sm:$0xf]
  %v59 = vld [vmem:[%s1 + $0x70] sm:$0xf]
  %v60 = vld [vmem:[%s1 + $0x74] sm:$0xf]
  %v61 = vld [vmem:[%s1 + $0x78] sm:$0xf]
  %v62 = vld [vmem:[%s1 + $0x7c] sm:$0xf]
  %v63 = vld [vmem:[%s2] sm:$0x1]
  %v65 = vlaneseq
  %v66 = vshrl.u32 %v65, 7
  %v67 = vsub.s32 0, %v66
  %v68 = vrot.slane %v63, %v67
  %v86 = vunpack.c.l.b16 %v15
  %v87 = vunpack.c.h.b16 %v15
  %v88 = vunpack.c.l.b16 %v16
  %v89 = vunpack.c.h.b16 %v16
  %v90 = vunpack.c.l.b16 %v17
  %v91 = vunpack.c.h.b16 %v17
  %v92 = vunpack.c.l.b16 %v18
  %v93 = vunpack.c.h.b16 %v18
  %v94 = vunpack.c.l.b16 %v19
  %v95 = vunpack.c.h.b16 %v19
  %v96 = vunpack.c.l.b16 %v20
  %v97 = vunpack.c.h.b16 %v20
  %v98 = vunpack.c.l.b16 %v21
  %v99 = vunpack.c.h.b16 %v21
  %v100 = vunpack.c.l.b16 %v22
  %v101 = vunpack.c.h.b16 %v22
  %v102 = vunpack.c.l.b16 %v23
  %v103 = vunpack.c.h.b16 %v23
  %v104 = vunpack.c.l.b16 %v24
  %v105 = vunpack.c.h.b16 %v24
  %v106 = vunpack.c.l.b16 %v25
  %v107 = vunpack.c.h.b16 %v25
  %v108 = vunpack.c.l.b16 %v26
  %v109 = vunpack.c.h.b16 %v26
  %v110 = vunpack.c.l.b16 %v27
  %v111 = vunpack.c.h.b16 %v27
  %v112 = vunpack.c.l.b16 %v28
  %v113 = vunpack.c.h.b16 %v28
  %v114 = vunpack.c.l.b16 %v29
  %v115 = vunpack.c.h.b16 %v29
  %v116 = vunpack.c.l.b16 %v30
  %v117 = vunpack.c.h.b16 %v30
  %v118 = vpack.c.b16 %v88, %v86
  %v119 = vpack.c.b16 %v89, %v87
  %v120 = vpack.c.b16 %v92, %v90
  %v121 = vpack.c.b16 %v93, %v91
  %v122 = vpack.c.b16 %v96, %v94
  %v123 = vpack.c.b16 %v97, %v95
  %v124 = vpack.c.b16 %v100, %v98
  %v125 = vpack.c.b16 %v101, %v99
  %v126 = vpack.c.b16 %v104, %v102
  %v127 = vpack.c.b16 %v105, %v103
  %v128 = vpack.c.b16 %v108, %v106
  %v129 = vpack.c.b16 %v109, %v107
  %v130 = vpack.c.b16 %v112, %v110
  %v131 = vpack.c.b16 %v113, %v111
  %v132 = vpack.c.b16 %v116, %v114
  %v133 = vpack.c.b16 %v117, %v115
  %v182 = vunpack.c.l.b16 %v31
  %v183 = vunpack.c.l.b16 %v32
  %v184 = vunpack.c.l.b16 %v33
  %v185 = vunpack.c.l.b16 %v34
  %v186 = vunpack.c.l.b16 %v35
  %v187 = vunpack.c.l.b16 %v36
  %v188 = vunpack.c.l.b16 %v37
  %v189 = vunpack.c.l.b16 %v38
  %v190 = vunpack.c.l.b16 %v39
  %v191 = vunpack.c.l.b16 %v40
  %v192 = vunpack.c.l.b16 %v41
  %v193 = vunpack.c.l.b16 %v42
  %v194 = vunpack.c.l.b16 %v43
  %v195 = vunpack.c.l.b16 %v44
  %v196 = vunpack.c.l.b16 %v45
  %v197 = vunpack.c.l.b16 %v46
  %v198 = vunpack.c.l.b16 %v47
  %v199 = vunpack.c.l.b16 %v48
  %v200 = vunpack.c.l.b16 %v49
  %v201 = vunpack.c.l.b16 %v50
  %v202 = vunpack.c.l.b16 %v51
  %v203 = vunpack.c.l.b16 %v52
  %v204 = vunpack.c.l.b16 %v53
  %v205 = vunpack.c.l.b16 %v54
  %v206 = vunpack.c.l.b16 %v55
  %v207 = vunpack.c.l.b16 %v56
  %v208 = vunpack.c.l.b16 %v57
  %v209 = vunpack.c.l.b16 %v58
  %v210 = vunpack.c.l.b16 %v59
  %v211 = vunpack.c.l.b16 %v60
  %v212 = vunpack.c.l.b16 %v61
  %v213 = vunpack.c.l.b16 %v62
  %v214 = vpack.c.b16 %v183, %v182
  %v215 = vpack.c.b16 %v185, %v184
  %v216 = vpack.c.b16 %v187, %v186
  %v217 = vpack.c.b16 %v189, %v188
  %v218 = vpack.c.b16 %v191, %v190
  %v219 = vpack.c.b16 %v193, %v192
  %v220 = vpack.c.b16 %v195, %v194
  %v221 = vpack.c.b16 %v197, %v196
  %v222 = vpack.c.b16 %v199, %v198
  %v223 = vpack.c.b16 %v201, %v200
  %v224 = vpack.c.b16 %v203, %v202
  %v225 = vpack.c.b16 %v205, %v204
  %v226 = vpack.c.b16 %v207, %v206
  %v227 = vpack.c.b16 %v209, %v208
  %v228 = vpack.c.b16 %v211, %v210
  %v229 = vpack.c.b16 %v213, %v212
  %246 = vmatprep.subr.bf16.mxu0 0
  %247 = vmatpush1.bf16.msra.mxu0 %v214
  %248 = vmatprep.subr.bf16.mxu0 0
  %249 = vmatpush1.bf16.msra.mxu0 %v215
  %250 = vmatprep.subr.bf16.mxu0 0
  %251 = vmatpush1.bf16.msra.mxu0 %v216
  %252 = vmatprep.subr.bf16.mxu0 0
  %253 = vmatpush1.bf16.msra.mxu0 %v217
  %254 = vmatprep.subr.bf16.mxu0 0
  %255 = vmatpush1.bf16.msra.mxu0 %v218
  %256 = vmatprep.subr.bf16.mxu0 0
  %257 = vmatpush1.bf16.msra.mxu0 %v219
  %258 = vmatprep.subr.bf16.mxu0 0
  %259 = vmatpush1.bf16.msra.mxu0 %v220
  %260 = vmatprep.subr.bf16.mxu0 0
  %261 = vmatpush1.bf16.msra.mxu0 %v221
  %262 = vmatprep.subr.bf16.mxu0 0
  %263 = vmatpush1.bf16.msra.mxu0 %v222
  %264 = vmatprep.subr.bf16.mxu0 0
  %265 = vmatpush1.bf16.msra.mxu0 %v223
  %266 = vmatprep.subr.bf16.mxu0 0
  %267 = vmatpush1.bf16.msra.mxu0 %v224
  %268 = vmatprep.subr.bf16.mxu0 0
  %269 = vmatpush1.bf16.msra.mxu0 %v225
  %270 = vmatprep.subr.bf16.mxu0 0
  %271 = vmatpush1.bf16.msra.mxu0 %v226
  %272 = vmatprep.subr.bf16.mxu0 0
  %273 = vmatpush1.bf16.msra.mxu0 %v227
  %274 = vmatprep.subr.bf16.mxu0 0
  %275 = vmatpush1.bf16.msra.mxu0 %v228
  %276 = vmatprep.subr.bf16.mxu0 0
  %277 = vmatpush1.bf16.msra.mxu0 %v229
  %278 = vmatprep.mubr.bf16.mxu0 %v119
  %279 = vmatmul.mubr.bf16.gmra.mrb[0].mxu0 %v118
  %v280 = vpop.f32.mrb[0].mxu0
  %v281 = vadd.f32 %v68, %v280
  %v282 = vpop.f32.mrb[0].mxu0
  %v283 = vpop.f32.mrb[0].mxu0
  %v284 = vadd.f32 %v68, %v283
  %v285 = vpop.f32.mrb[0].mxu0
  %286 = vmatprep.mubr.bf16.mxu0 %v121
  %287 = vmatmul.mubr.bf16.gmra.mrb[0].mxu0 %v120
  %v288 = vpop.f32.mrb[0].mxu0
  %v289 = vadd.f32 %v68, %v288
  %v290 = vpop.f32.mrb[0].mxu0
  %v291 = vpop.f32.mrb[0].mxu0
  %v292 = vadd.f32 %v68, %v291
  %v293 = vpop.f32.mrb[0].mxu0
  %294 = vmatprep.mubr.bf16.mxu0 %v123
  %295 = vmatmul.mubr.bf16.gmra.mrb[0].mxu0 %v122
  %v296 = vpop.f32.mrb[0].mxu0
  %v297 = vadd.f32 %v68, %v296
  %v298 = vpop.f32.mrb[0].mxu0
  %v299 = vpop.f32.mrb[0].mxu0
  %v300 = vadd.f32 %v68, %v299
  %v301 = vpop.f32.mrb[0].mxu0
  %302 = vmatprep.mubr.bf16.mxu0 %v125
  %303 = vmatmul.mubr.bf16.gmra.mrb[0].mxu0 %v124
  %v304 = vpop.f32.mrb[0].mxu0
  %v305 = vadd.f32 %v68, %v304
  %v306 = vpop.f32.mrb[0].mxu0
  %v307 = vpop.f32.mrb[0].mxu0
  %v308 = vadd.f32 %v68, %v307
  %v309 = vpop.f32.mrb[0].mxu0
  %310 = vmatprep.mubr.bf16.mxu0 %v127
  %311 = vmatmul.mubr.bf16.gmra.mrb[0].mxu0 %v126
  %v312 = vpop.f32.mrb[0].mxu0
  %v313 = vadd.f32 %v68, %v312
  %v314 = vpop.f32.mrb[0].mxu0
  %v315 = vpop.f32.mrb[0].mxu0
  %v316 = vadd.f32 %v68, %v315
  %v317 = vpop.f32.mrb[0].mxu0
  %318 = vmatprep.mubr.bf16.mxu0 %v129
  %319 = vmatmul.mubr.bf16.gmra.mrb[0].mxu0 %v128
  %v320 = vpop.f32.mrb[0].mxu0
  %v321 = vadd.f32 %v68, %v320
  %v322 = vpop.f32.mrb[0].mxu0
  %v323 = vpop.f32.mrb[0].mxu0
  %v324 = vadd.f32 %v68, %v323
  %v325 = vpop.f32.mrb[0].mxu0
  %326 = vmatprep.mubr.bf16.mxu0 %v131
  %327 = vmatmul.mubr.bf16.gmra.mrb[0].mxu0 %v130
  %v328 = vpop.f32.mrb[0].mxu0
  %v329 = vadd.f32 %v68, %v328
  %v330 = vpop.f32.mrb[0].mxu0
  %v331 = vpop.f32.mrb[0].mxu0
  %v332 = vadd.f32 %v68, %v331
  %v333 = vpop.f32.mrb[0].mxu0
  %334 = vmatprep.mubr.bf16.mxu0 %v133
  %335 = vmatmul.mubr.bf16.gmra.mrb[0].mxu0 %v132
  %v336 = vpop.f32.mrb[0].mxu0
  %v337 = vadd.f32 %v68, %v336
  %v338 = vpop.f32.mrb[0].mxu0
  %v339 = vpop.f32.mrb[0].mxu0
  %v340 = vadd.f32 %v68, %v339
  %v341 = vpop.f32.mrb[0].mxu0
  %342 = vdwg.mxu0
  %v343 = vmax.f32 %v281, 0.0
  %v344 = vmax.f32 %v284, 0.0
  %v345 = vmax.f32 %v289, 0.0
  %v346 = vmax.f32 %v292, 0.0
  %v347 = vmax.f32 %v297, 0.0
  %v348 = vmax.f32 %v300, 0.0
  %v349 = vmax.f32 %v305, 0.0
  %v350 = vmax.f32 %v308, 0.0
  %v351 = vmax.f32 %v313, 0.0
  %v352 = vmax.f32 %v316, 0.0
  %v353 = vmax.f32 %v321, 0.0
  %v354 = vmax.f32 %v324, 0.0
  %v355 = vmax.f32 %v329, 0.0
  %v356 = vmax.f32 %v332, 0.0
  %v357 = vmax.f32 %v337, 0.0
  %v358 = vmax.f32 %v340, 0.0
  %v359 = vpack.c.bf16 %v344, %v343
  %v360 = vpack.c.bf16 %v346, %v345
  %v361 = vpack.c.bf16 %v348, %v347
  %v362 = vpack.c.bf16 %v350, %v349
  %v363 = vpack.c.bf16 %v352, %v351
  %v364 = vpack.c.bf16 %v354, %v353
  %v365 = vpack.c.bf16 %v356, %v355
  %v366 = vpack.c.bf16 %v358, %v357
  %v375 = vunpack.c.l.b16 %v359
  %v376 = vunpack.c.h.b16 %v359
  %v377 = vunpack.c.l.b16 %v360
  %v378 = vunpack.c.h.b16 %v360
  %v379 = vunpack.c.l.b16 %v361
  %v380 = vunpack.c.h.b16 %v361
  %v381 = vunpack.c.l.b16 %v362
  %v382 = vunpack.c.h.b16 %v362
  %v383 = vunpack.c.l.b16 %v363
  %v384 = vunpack.c.h.b16 %v363
  %v385 = vunpack.c.l.b16 %v364
  %v386 = vunpack.c.h.b16 %v364
  %v387 = vunpack.c.l.b16 %v365
  %v388 = vunpack.c.h.b16 %v365
  %v389 = vunpack.c.l.b16 %v366
  %v390 = vunpack.c.h.b16 %v366
  %v391 = vpack.c.b16 %v375, %v375
  %v392 = vpack.c.b16 %v376, %v376
  %v393 = vpack.c.b16 %v377, %v377
  %v394 = vpack.c.b16 %v378, %v378
  %v395 = vpack.c.b16 %v379, %v379
  %v396 = vpack.c.b16 %v380, %v380
  %v397 = vpack.c.b16 %v381, %v381
  %v398 = vpack.c.b16 %v382, %v382
  %v399 = vpack.c.b16 %v383, %v383
  %v400 = vpack.c.b16 %v384, %v384
  %v401 = vpack.c.b16 %v385, %v385
  %v402 = vpack.c.b16 %v386, %v386
  %v403 = vpack.c.b16 %v387, %v387
  %v404 = vpack.c.b16 %v388, %v388
  %v405 = vpack.c.b16 %v389, %v389
  %v406 = vpack.c.b16 %v390, %v390
  %423 = vst [vmem:[%s3] sm:$0xf] %v391
  %424 = vst [vmem:[%s3 + $0x4] sm:$0xf] %v392
  %425 = vst [vmem:[%s3 + $0x8] sm:$0xf] %v393
  %426 = vst [vmem:[%s3 + $0xc] sm:$0xf] %v394
  %427 = vst [vmem:[%s3 + $0x10] sm:$0xf] %v395
  %428 = vst [vmem:[%s3 + $0x14] sm:$0xf] %v396
  %429 = vst [vmem:[%s3 + $0x18] sm:$0xf] %v397
  %430 = vst [vmem:[%s3 + $0x1c] sm:$0xf] %v398
  %431 = vst [vmem:[%s3 + $0x20] sm:$0xf] %v399
  %432 = vst [vmem:[%s3 + $0x24] sm:$0xf] %v400
  %433 = vst [vmem:[%s3 + $0x28] sm:$0xf] %v401
  %434 = vst [vmem:[%s3 + $0x2c] sm:$0xf] %v402
  %435 = vst [vmem:[%s3 + $0x30] sm:$0xf] %v403
  %436 = vst [vmem:[%s3 + $0x34] sm:$0xf] %v404
  %437 = vst [vmem:[%s3 + $0x38] sm:$0xf] %v405
  %438 = vst [vmem:[%s3 + $0x3c] sm:$0xf] %v406
  // Predicated region
  $region14: #{actor_critic_forward.3} parent=0 // pred_check
    _
  $region15: #{actor_critic_forward.3} parent=0 // pred_check_branch
    %440 = sbr.rel (0) target = $region17
  $region16: #{actor_critic_forward.3} parent=0 // pred_region
    _
  $region17: #{actor_critic_forward.3} parent=0 // pred_fallthru
    _
  // Predicated region
  $region18: #{actor_critic_forward.3} parent=0 // pred_check
    _
  $region19: #{actor_critic_forward.3} parent=0 // pred_check_branch
    %442 = sbr.rel (0) target = $region21
  $region20: #{actor_critic_forward.3} parent=0 // pred_region
    _
  $region21: #{actor_critic_forward.3} parent=0 // pred_fallthru
    _

// kernel: actor_critic_forward.4
$region0: #{actor_critic_forward.4}
  #allocation0 [shape = 'u32[]', space=smem, size = 0x4, offset = 0x4, fixed_abs, tag = 'smem constant byte address 0x4 - core index']
  #allocation1 [shape = 'u32[144,128]{1,0:T(1,128)}', space=vmem, size = 0x12000, scoped, tag = 'internal scratch']
  %s0 = inlined_call_operand.vmem [shape: bf16[18,2048], index: 0, kind: input, shape index: {}]
  %s1 = inlined_call_operand.vmem [shape: bf16[2048,128], index: 1, kind: input, shape index: {}]
  %s2 = inlined_call_operand.vmem [shape: f32[1,128], index: 2, kind: input, shape index: {}]
  %s3 = inlined_call_operand.vmem [shape: bf16[18,128], index: 3, kind: output, shape index: {}]
  %s4 = sld [smem:[#allocation0]]
  $region22: #{actor_critic_forward.4} parent=0
    _
  %s6 = ssub.s32 1, %s4
  %s7 = scalar_select 0, %s6, %s4
  // Predicated region
  $region2: #{actor_critic_forward.4} parent=0 // pred_check
    _
  $region3: #{actor_critic_forward.4} parent=0 // pred_check_branch
    %9 = sbr.rel (0) target = $region5
  $region4: #{actor_critic_forward.4} parent=0 // pred_region
    _
  $region5: #{actor_critic_forward.4} parent=0 // pred_fallthru
    _
  // Predicated region
  $region6: #{actor_critic_forward.4} parent=0 // pred_check
    _
  $region7: #{actor_critic_forward.4} parent=0 // pred_check_branch
    %11 = sbr.rel (0) target = $region9
  $region8: #{actor_critic_forward.4} parent=0 // pred_region
    _
  $region9: #{actor_critic_forward.4} parent=0 // pred_fallthru
    _
  // Predicated region
  $region10: #{actor_critic_forward.4} parent=0 // pred_check
    _
  $region11: #{actor_critic_forward.4} parent=0 // pred_check_branch
    %13 = sbr.rel (0) target = $region13
  $region12: #{actor_critic_forward.4} parent=0 // pred_region
    _
  $region13: #{actor_critic_forward.4} parent=0 // pred_fallthru
    _
  %v15 = vld [vmem:[%s0] sm:$0xff]
  %v16 = vld [vmem:[%s0 + $0x8] sm:$0xff]
  %v17 = vld [vmem:[%s0 + $0x10] sm:$0xff]
  %v18 = vld [vmem:[%s0 + $0x18] sm:$0xff]
  %v19 = vld [vmem:[%s0 + $0x20] sm:$0xff]
  %v20 = vld [vmem:[%s0 + $0x28] sm:$0xff]
  %v21 = vld [vmem:[%s0 + $0x30] sm:$0xff]
  %v22 = vld [vmem:[%s0 + $0x38] sm:$0xff]
  %v23 = vld [vmem:[%s0 + $0x40] sm:$0xff]
  %v24 = vld [vmem:[%s0 + $0x48] sm:$0xff]
  %v25 = vld [vmem:[%s0 + $0x50] sm:$0xff]
  %v26 = vld [vmem:[%s0 + $0x58] sm:$0xff]
  %v27 = vld [vmem:[%s0 + $0x60] sm:$0xff]
  %v28 = vld [vmem:[%s0 + $0x68] sm:$0xff]
  %v29 = vld [vmem:[%s0 + $0x70] sm:$0xff]
  %v30 = vld [vmem:[%s0 + $0x78] sm:$0xff]
  %v31 = vld [vmem:[%s0 + $0x80] sm:$0x11]
  %v32 = vld [vmem:[%s0 + $0x88] sm:$0x11]
  %v33 = vld [vmem:[%s0 + $0x90] sm:$0x11]
  %v34 = vld [vmem:[%s0 + $0x98] sm:$0x11]
  %v35 = vld [vmem:[%s0 + $0xa0] sm:$0x11]
  %v36 = vld [vmem:[%s0 + $0xa8] sm:$0x11]
  %v37 = vld [vmem:[%s0 + $0xb0] sm:$0x11]
  %v38 = vld [vmem:[%s0 + $0xb8] sm:$0x11]
  %v39 = vld [vmem:[%s1] sm:$0xf]
  %v40 = vld [vmem:[%s1 + $0x4] sm:$0xf]
  %v41 = vld [vmem:[%s1 + $0x8] sm:$0xf]
  %v42 = vld [vmem:[%s1 + $0xc] sm:$0xf]
  %v43 = vld [vmem:[%s1 + $0x10] sm:$0xf]
  %v44 = vld [vmem:[%s1 + $0x14] sm:$0xf]
  %v45 = vld [vmem:[%s1 + $0x18] sm:$0xf]
  %v46 = vld [vmem:[%s1 + $0x1c] sm:$0xf]
  %v47 = vld [vmem:[%s1 + $0x20] sm:$0xf]
  %v48 = vld [vmem:[%s1 + $0x24] sm:$0xf]
  %v49 = vld [vmem:[%s1 + $0x28] sm:$0xf]
  %v50 = vld [vmem:[%s1 + $0x2c] sm:$0xf]
  %v51 = vld [vmem:[%s1 + $0x30] sm:$0xf]
  %v52 = vld [vmem:[%s1 + $0x34] sm:$0xf]
  %v53 = vld [vmem:[%s1 + $0x38] sm:$0xf]
  %v54 = vld [vmem:[%s1 + $0x3c] sm:$0xf]
  %v55 = vld [vmem:[%s1 + $0x40] sm:$0xf]
  %v56 = vld [vmem:[%s1 + $0x44] sm:$0xf]
  %v57 = vld [vmem:[%s1 + $0x48] sm:$0xf]
  %v58 = vld [vmem:[%s1 + $0x4c] sm:$0xf]
  %v59 = vld [vmem:[%s1 + $0x50] sm:$0xf]
  %v60 = vld [vmem:[%s1 + $0x54] sm:$0xf]
  %v61 = vld [vmem:[%s1 + $0x58] sm:$0xf]
  %v62 = vld [vmem:[%s1 + $0x5c] sm:$0xf]
  %v63 = vld [vmem:[%s1 + $0x60] sm:$0xf]
  %v64 = vld [vmem:[%s1 + $0x64] sm:$0xf]
  %v65 = vld [vmem:[%s1 + $0x68] sm:$0xf]
  %v66 = vld [vmem:[%s1 + $0x6c] sm:$0xf]
  %v67 = vld [vmem:[%s1 + $0x70] sm:$0xf]
  %v68 = vld [vmem:[%s1 + $0x74] sm:$0xf]
  %v69 = vld [vmem:[%s1 + $0x78] sm:$0xf]
  %v70 = vld [vmem:[%s1 + $0x7c] sm:$0xf]
  %v71 = vld [vmem:[%s1 + $0x80] sm:$0xf]
  %v72 = vld [vmem:[%s1 + $0x84] sm:$0xf]
  %v73 = vld [vmem:[%s1 + $0x88] sm:$0xf]
  %v74 = vld [vmem:[%s1 + $0x8c] sm:$0xf]
  %v75 = vld [vmem:[%s1 + $0x90] sm:$0xf]
  %v76 = vld [vmem:[%s1 + $0x94] sm:$0xf]
  %v77 = vld [vmem:[%s1 + $0x98] sm:$0xf]
  %v78 = vld [vmem:[%s1 + $0x9c] sm:$0xf]
  %v79 = vld [vmem:[%s1 + $0xa0] sm:$0xf]
  %v80 = vld [vmem:[%s1 + $0xa4] sm:$0xf]
  %v81 = vld [vmem:[%s1 + $0xa8] sm:$0xf]
  %v82 = vld [vmem:[%s1 + $0xac] sm:$0xf]
  %v83 = vld [vmem:[%s1 + $0xb0] sm:$0xf]
  %v84 = vld [vmem:[%s1 + $0xb4] sm:$0xf]
  %v85 = vld [vmem:[%s1 + $0xb8] sm:$0xf]
  %v86 = vld [vmem:[%s1 + $0xbc] sm:$0xf]
  %v87 = vld [vmem:[%s1 + $0xc0] sm:$0xf]
  %v88 = vld [vmem:[%s1 + $0xc4] sm:$0xf]
  %v89 = vld [vmem:[%s1 + $0xc8] sm:$0xf]
  %v90 = vld [vmem:[%s1 + $0xcc] sm:$0xf]
  %v91 = vld [vmem:[%s1 + $0xd0] sm:$0xf]
  %v92 = vld [vmem:[%s1 + $0xd4] sm:$0xf]
  %v93 = vld [vmem:[%s1 + $0xd8] sm:$0xf]
  %v94 = vld [vmem:[%s1 + $0xdc] sm:$0xf]
  %v95 = vld [vmem:[%s1 + $0xe0] sm:$0xf]
  %v96 = vld [vmem:[%s1 + $0xe4] sm:$0xf]
  %v97 = vld [vmem:[%s1 + $0xe8] sm:$0xf]
  %v98 = vld [vmem:[%s1 + $0xec] sm:$0xf]
  %v99 = vld [vmem:[%s1 + $0xf0] sm:$0xf]
  %v100 = vld [vmem:[%s1 + $0xf4] sm:$0xf]
  %v101 = vld [vmem:[%s1 + $0xf8] sm:$0xf]
  %v102 = vld [vmem:[%s1 + $0xfc] sm:$0xf]
  %v103 = vld [vmem:[%s1 + $0x100] sm:$0xf]
  %v104 = vld [vmem:[%s1 + $0x104] sm:$0xf]
  %v105 = vld [vmem:[%s1 + $0x108] sm:$0xf]
  %v106 = vld [vmem:[%s1 + $0x10c] sm:$0xf]
  %v107 = vld [vmem:[%s1 + $0x110] sm:$0xf]
  %v108 = vld [vmem:[%s1 + $0x114] sm:$0xf]
  %v109 = vld [vmem:[%s1 + $0x118] sm:$0xf]
  %v110 = vld [vmem:[%s1 + $0x11c] sm:$0xf]
  %v111 = vld [vmem:[%s1 + $0x120] sm:$0xf]
  %v112 = vld [vmem:[%s1 + $0x124] sm:$0xf]
  %v113 = vld [vmem:[%s1 + $0x128] sm:$0xf]
  %v114 = vld [vmem:[%s1 + $0x12c] sm:$0xf]
  %v115 = vld [vmem:[%s1 + $0x130] sm:$0xf]
  %v116 = vld [vmem:[%s1 + $0x134] sm:$0xf]
  %v117 = vld [vmem:[%s1 + $0x138] sm:$0xf]
  %v118 = vld [vmem:[%s1 + $0x13c] sm:$0xf]
  %v119 = vld [vmem:[%s1 + $0x140] sm:$0xf]
  %v120 = vld [vmem:[%s1 + $0x144] sm:$0xf]
  %v121 = vld [vmem:[%s1 + $0x148] sm:$0xf]
  %v122 = vld [vmem:[%s1 + $0x14c] sm:$0xf]
  %v123 = vld [vmem:[%s1 + $0x150] sm:$0xf]
  %v124 = vld [vmem:[%s1 + $0x154] sm:$0xf]
  %v125 = vld [vmem:[%s1 + $0x158] sm:$0xf]
  %v126 = vld [vmem:[%s1 + $0x15c] sm:$0xf]
  %v127 = vld [vmem:[%s1 + $0x160] sm:$0xf]
  %v128 = vld [vmem:[%s1 + $0x164] sm:$0xf]
  %v129 = vld [vmem:[%s1 + $0x168] sm:$0xf]
  %v130 = vld [vmem:[%s1 + $0x16c] sm:$0xf]
  %v131 = vld [vmem:[%s1 + $0x170] sm:$0xf]
  %v132 = vld [vmem:[%s1 + $0x174] sm:$0xf]
  %v133 = vld [vmem:[%s1 + $0x178] sm:$0xf]
  %v134 = vld [vmem:[%s1 + $0x17c] sm:$0xf]
  %v135 = vld [vmem:[%s1 + $0x180] sm:$0xf]
  %v136 = vld [vmem:[%s1 + $0x184] sm:$0xf]
  %v137 = vld [vmem:[%s1 + $0x188] sm:$0xf]
  %v138 = vld [vmem:[%s1 + $0x18c] sm:$0xf]
  %v139 = vld [vmem:[%s1 + $0x190] sm:$0xf]
  %v140 = vld [vmem:[%s1 + $0x194] sm:$0xf]
  %v141 = vld [vmem:[%s1 + $0x198] sm:$0xf]
  %v142 = vld [vmem:[%s1 + $0x19c] sm:$0xf]
  %v143 = vld [vmem:[%s1 + $0x1a0] sm:$0xf]
  %v144 = vld [vmem:[%s1 + $0x1a4] sm:$0xf]
  %v145 = vld [vmem:[%s1 + $0x1a8] sm:$0xf]
  %v146 = vld [vmem:[%s1 + $0x1ac] sm:$0xf]
  %v147 = vld [vmem:[%s1 + $0x1b0] sm:$0xf]
  %v148 = vld [vmem:[%s1 + $0x1b4] sm:$0xf]
  %v149 = vld [vmem:[%s1 + $0x1b8] sm:$0xf]
  %v150 = vld [vmem:[%s1 + $0x1bc] sm:$0xf]
  %v151 = vld [vmem:[%s1 + $0x1c0] sm:$0xf]
  %v152 = vld [vmem:[%s1 + $0x1c4] sm:$0xf]
  %v153 = vld [vmem:[%s1 + $0x1c8] sm:$0xf]
  %v154 = vld [vmem:[%s1 + $0x1cc] sm:$0xf]
  %v155 = vld [vmem:[%s1 + $0x1d0] sm:$0xf]
  %v156 = vld [vmem:[%s1 + $0x1d4] sm:$0xf]
  %v157 = vld [vmem:[%s1 + $0x1d8] sm:$0xf]
  %v158 = vld [vmem:[%s1 + $0x1dc] sm:$0xf]
  %v159 = vld [vmem:[%s1 + $0x1e0] sm:$0xf]
  %v160 = vld [vmem:[%s1 + $0x1e4] sm:$0xf]
  %v161 = vld [vmem:[%s1 + $0x1e8] sm:$0xf]
  %v162 = vld [vmem:[%s1 + $0x1ec] sm:$0xf]
  %v163 = vld [vmem:[%s1 + $0x1f0] sm:$0xf]
  %v164 = vld [vmem:[%s1 + $0x1f4] sm:$0xf]
  %v165 = vld [vmem:[%s1 + $0x1f8] sm:$0xf]
  %v166 = vld [vmem:[%s1 + $0x1fc] sm:$0xf]
  %v167 = vld [vmem:[%s1 + $0x200] sm:$0xf]
  %v168 = vld [vmem:[%s1 + $0x204] sm:$0xf]
  %v169 = vld [vmem:[%s1 + $0x208] sm:$0xf]
  %v170 = vld [vmem:[%s1 + $0x20c] sm:$0xf]
  %v171 = vld [vmem:[%s1 + $0x210] sm:$0xf]
  %v172 = vld [vmem:[%s1 + $0x214] sm:$0xf]
  %v173 = vld [vmem:[%s1 + $0x218] sm:$0xf]
  %v174 = vld [vmem:[%s1 + $0x21c] sm:$0xf]
  %v175 = vld [vmem:[%s1 + $0x220] sm:$0xf]
  %v176 = vld [vmem:[%s1 + $0x224] sm:$0xf]
  %v177 = vld [vmem:[%s1 + $0x228] sm:$0xf]
  %v178 = vld [vmem:[%s1 + $0x22c] sm:$0xf]
  %v179 = vld [vmem:[%s1 + $0x230] sm:$0xf]
  %v180 = vld [vmem:[%s1 + $0x234] sm:$0xf]
  %v181 = vld [vmem:[%s1 + $0x238] sm:$0xf]
  %v182 = vld [vmem:[%s1 + $0x23c] sm:$0xf]
  %v183 = vld [vmem:[%s1 + $0x240] sm:$0xf]
  %v184 = vld [vmem:[%s1 + $0x244] sm:$0xf]
  %v185 = vld [vmem:[%s1 + $0x248] sm:$0xf]
  %v186 = vld [vmem:[%s1 + $0x24c] sm:$0xf]
  %v187 = vld [vmem:[%s1 + $0x250] sm:$0xf]
  %v188 = vld [vmem:[%s1 + $0x254] sm:$0xf]
  %v189 = vld [vmem:[%s1 + $0x258] sm:$0xf]
  %v190 = vld [vmem:[%s1 + $0x25c] sm:$0xf]
  %v191 = vld [vmem:[%s1 + $0x260] sm:$0xf]
  %v192 = vld [vmem:[%s1 + $0x264] sm:$0xf]
  %v193 = vld [vmem:[%s1 + $0x268] sm:$0xf]
  %v194 = vld [vmem:[%s1 + $0x26c] sm:$0xf]
  %v195 = vld [vmem:[%s1 + $0x270] sm:$0xf]
  %v196 = vld [vmem:[%s1 + $0x274] sm:$0xf]
  %v197 = vld [vmem:[%s1 + $0x278] sm:$0xf]
  %v198 = vld [vmem:[%s1 + $0x27c] sm:$0xf]
  %v199 = vld [vmem:[%s1 + $0x280] sm:$0xf]
  %v200 = vld [vmem:[%s1 + $0x284] sm:$0xf]
  %v201 = vld [vmem:[%s1 + $0x288] sm:$0xf]
  %v202 = vld [vmem:[%s1 + $0x28c] sm:$0xf]
  %v203 = vld [vmem:[%s1 + $0x290] sm:$0xf]
  %v204 = vld [vmem:[%s1 + $0x294] sm:$0xf]
  %v205 = vld [vmem:[%s1 + $0x298] sm:$0xf]
  %v206 = vld [vmem:[%s1 + $0x29c] sm:$0xf]
  %v207 = vld [vmem:[%s1 + $0x2a0] sm:$0xf]
  %v208 = vld [vmem:[%s1 + $0x2a4] sm:$0xf]
  %v209 = vld [vmem:[%s1 + $0x2a8] sm:$0xf]
  %v210 = vld [vmem:[%s1 + $0x2ac] sm:$0xf]
  %v211 = vld [vmem:[%s1 + $0x2b0] sm:$0xf]
  %v212 = vld [vmem:[%s1 + $0x2b4] sm:$0xf]
  %v213 = vld [vmem:[%s1 + $0x2b8] sm:$0xf]
  %v214 = vld [vmem:[%s1 + $0x2bc] sm:$0xf]
  %v215 = vld [vmem:[%s1 + $0x2c0] sm:$0xf]
  %v216 = vld [vmem:[%s1 + $0x2c4] sm:$0xf]
  %v217 = vld [vmem:[%s1 + $0x2c8] sm:$0xf]
  %v218 = vld [vmem:[%s1 + $0x2cc] sm:$0xf]
  %v219 = vld [vmem:[%s1 + $0x2d0] sm:$0xf]
  %v220 = vld [vmem:[%s1 + $0x2d4] sm:$0xf]
  %v221 = vld [vmem:[%s1 + $0x2d8] sm:$0xf]
  %v222 = vld [vmem:[%s1 + $0x2dc] sm:$0xf]
  %v223 = vld [vmem:[%s1 + $0x2e0] sm:$0xf]
  %v224 = vld [vmem:[%s1 + $0x2e4] sm:$0xf]
  %v225 = vld [vmem:[%s1 + $0x2e8] sm:$0xf]
  %v226 = vld [vmem:[%s1 + $0x2ec] sm:$0xf]
  %v227 = vld [vmem:[%s1 + $0x2f0] sm:$0xf]
  %v228 = vld [vmem:[%s1 + $0x2f4] sm:$0xf]
  %v229 = vld [vmem:[%s1 + $0x2f8] sm:$0xf]
  %v230 = vld [vmem:[%s1 + $0x2fc] sm:$0xf]
  %v231 = vld [vmem:[%s1 + $0x300] sm:$0xf]
  %v232 = vld [vmem:[%s1 + $0x304] sm:$0xf]
  %v233 = vld [vmem:[%s1 + $0x308] sm:$0xf]
  %v234 = vld [vmem:[%s1 + $0x30c] sm:$0xf]
  %v235 = vld [vmem:[%s1 + $0x310] sm:$0xf]
  %v236 = vld [vmem:[%s1 + $0x314] sm:$0xf]
  %v237 = vld [vmem:[%s1 + $0x318] sm:$0xf]
  %v238 = vld [vmem:[%s1 + $0x31c] sm:$0xf]
  %v239 = vld [vmem:[%s1 + $0x320] sm:$0xf]
  %v240 = vld [vmem:[%s1 + $0x324] sm:$0xf]
  %v241 = vld [vmem:[%s1 + $0x328] sm:$0xf]
  %v242 = vld [vmem:[%s1 + $0x32c] sm:$0xf]
  %v243 = vld [vmem:[%s1 + $0x330] sm:$0xf]
  %v244 = vld [vmem:[%s1 + $0x334] sm:$0xf]
  %v245 = vld [vmem:[%s1 + $0x338] sm:$0xf]
  %v246 = vld [vmem:[%s1 + $0x33c] sm:$0xf]
  %v247 = vld [vmem:[%s1 + $0x340] sm:$0xf]
  %v248 = vld [vmem:[%s1 + $0x344] sm:$0xf]
  %v249 = vld [vmem:[%s1 + $0x348] sm:$0xf]
  %v250 = vld [vmem:[%s1 + $0x34c] sm:$0xf]
  %v251 = vld [vmem:[%s1 + $0x350] sm:$0xf]
  %v252 = vld [vmem:[%s1 + $0x354] sm:$0xf]
  %v253 = vld [vmem:[%s1 + $0x358] sm:$0xf]
  %v254 = vld [vmem:[%s1 + $0x35c] sm:$0xf]
  %v255 = vld [vmem:[%s1 + $0x360] sm:$0xf]
  %v256 = vld [vmem:[%s1 + $0x364] sm:$0xf]
  %v257 = vld [vmem:[%s1 + $0x368] sm:$0xf]
  %v258 = vld [vmem:[%s1 + $0x36c] sm:$0xf]
  %v259 = vld [vmem:[%s1 + $0x370] sm:$0xf]
  %v260 = vld [vmem:[%s1 + $0x374] sm:$0xf]
  %v261 = vld [vmem:[%s1 + $0x378] sm:$0xf]
  %v262 = vld [vmem:[%s1 + $0x37c] sm:$0xf]
  %v263 = vld [vmem:[%s1 + $0x380] sm:$0xf]
  %v264 = vld [vmem:[%s1 + $0x384] sm:$0xf]
  %v265 = vld [vmem:[%s1 + $0x388] sm:$0xf]
  %v266 = vld [vmem:[%s1 + $0x38c] sm:$0xf]
  %v267 = vld [vmem:[%s1 + $0x390] sm:$0xf]
  %v268 = vld [vmem:[%s1 + $0x394] sm:$0xf]
  %v269 = vld [vmem:[%s1 + $0x398] sm:$0xf]
  %v270 = vld [vmem:[%s1 + $0x39c] sm:$0xf]
  %v271 = vld [vmem:[%s1 + $0x3a0] sm:$0xf]
  %v272 = vld [vmem:[%s1 + $0x3a4] sm:$0xf]
  %v273 = vld [vmem:[%s1 + $0x3a8] sm:$0xf]
  %v274 = vld [vmem:[%s1 + $0x3ac] sm:$0xf]
  %v275 = vld [vmem:[%s1 + $0x3b0] sm:$0xf]
  %v276 = vld [vmem:[%s1 + $0x3b4] sm:$0xf]
  %v277 = vld [vmem:[%s1 + $0x3b8] sm:$0xf]
  %v278 = vld [vmem:[%s1 + $0x3bc] sm:$0xf]
  %v279 = vld [vmem:[%s1 + $0x3c0] sm:$0xf]
  %v280 = vld [vmem:[%s1 + $0x3c4] sm:$0xf]
  %v281 = vld [vmem:[%s1 + $0x3c8] sm:$0xf]
  %v282 = vld [vmem:[%s1 + $0x3cc] sm:$0xf]
  %v283 = vld [vmem:[%s1 + $0x3d0] sm:$0xf]
  %v284 = vld [vmem:[%s1 + $0x3d4] sm:$0xf]
  %v285 = vld [vmem:[%s1 + $0x3d8] sm:$0xf]
  %v286 = vld [vmem:[%s1 + $0x3dc] sm:$0xf]
  %v287 = vld [vmem:[%s1 + $0x3e0] sm:$0xf]
  %v288 = vld [vmem:[%s1 + $0x3e4] sm:$0xf]
  %v289 = vld [vmem:[%s1 + $0x3e8] sm:$0xf]
  %v290 = vld [vmem:[%s1 + $0x3ec] sm:$0xf]
  %v291 = vld [vmem:[%s1 + $0x3f0] sm:$0xf]
  %v292 = vld [vmem:[%s1 + $0x3f4] sm:$0xf]
  %v293 = vld [vmem:[%s1 + $0x3f8] sm:$0xf]
  %v294 = vld [vmem:[%s1 + $0x3fc] sm:$0xf]
  %v295 = vld [vmem:[%s2] sm:$0x1]
  %v297 = vlaneseq
  %v298 = vshrl.u32 %v297, 7
  %v299 = vsub.s32 0, %v298
  %v300 = vrot.slane %v295, %v299
  %v326 = vunpack.c.l.b16 %v15
  %v327 = vunpack.c.h.b16 %v15
  %v328 = vunpack.c.l.b16 %v16
  %v329 = vunpack.c.h.b16 %v16
  %v330 = vunpack.c.l.b16 %v17
  %v331 = vunpack.c.h.b16 %v17
  %v332 = vunpack.c.l.b16 %v18
  %v333 = vunpack.c.h.b16 %v18
  %v334 = vunpack.c.l.b16 %v19
  %v335 = vunpack.c.h.b16 %v19
  %v336 = vunpack.c.l.b16 %v20
  %v337 = vunpack.c.h.b16 %v20
  %v338 = vunpack.c.l.b16 %v21
  %v339 = vunpack.c.h.b16 %v21
  %v340 = vunpack.c.l.b16 %v22
  %v341 = vunpack.c.h.b16 %v22
  %v342 = vunpack.c.l.b16 %v23
  %v343 = vunpack.c.h.b16 %v23
  %v344 = vunpack.c.l.b16 %v24
  %v345 = vunpack.c.h.b16 %v24
  %v346 = vunpack.c.l.b16 %v25
  %v347 = vunpack.c.h.b16 %v25
  %v348 = vunpack.c.l.b16 %v26
  %v349 = vunpack.c.h.b16 %v26
  %v350 = vunpack.c.l.b16 %v27
  %v351 = vunpack.c.h.b16 %v27
  %v352 = vunpack.c.l.b16 %v28
  %v353 = vunpack.c.h.b16 %v28
  %v354 = vunpack.c.l.b16 %v29
  %v355 = vunpack.c.h.b16 %v29
  %v356 = vunpack.c.l.b16 %v30
  %v357 = vunpack.c.h.b16 %v30
  %v358 = vunpack.c.l.b16 %v31
  %v359 = vunpack.c.h.b16 %v31
  %v360 = vunpack.c.l.b16 %v32
  %v361 = vunpack.c.h.b16 %v32
  %v362 = vunpack.c.l.b16 %v33
  %v363 = vunpack.c.h.b16 %v33
  %v364 = vunpack.c.l.b16 %v34
  %v365 = vunpack.c.h.b16 %v34
  %v366 = vunpack.c.l.b16 %v35
  %v367 = vunpack.c.h.b16 %v35
  %v368 = vunpack.c.l.b16 %v36
  %v369 = vunpack.c.h.b16 %v36
  %v370 = vunpack.c.l.b16 %v37
  %v371 = vunpack.c.h.b16 %v37
  %v372 = vunpack.c.l.b16 %v38
  %v373 = vunpack.c.h.b16 %v38
  %v374 = vpack.c.b16 %v342, %v326
  %v375 = vpack.c.b16 %v343, %v327
  %v376 = vpack.c.b16 %v344, %v328
  %v377 = vpack.c.b16 %v345, %v329
  %v378 = vpack.c.b16 %v346, %v330
  %v379 = vpack.c.b16 %v347, %v331
  %v380 = vpack.c.b16 %v348, %v332
  %v381 = vpack.c.b16 %v349, %v333
  %v382 = vpack.c.b16 %v350, %v334
  %v383 = vpack.c.b16 %v351, %v335
  %v384 = vpack.c.b16 %v352, %v336
  %v385 = vpack.c.b16 %v353, %v337
  %v386 = vpack.c.b16 %v354, %v338
  %v387 = vpack.c.b16 %v355, %v339
  %v388 = vpack.c.b16 %v356, %v340
  %v389 = vpack.c.b16 %v357, %v341
  %v390 = vpack.c.b16 %v358, %v358
  %v391 = vpack.c.b16 %v359, %v359
  %v392 = vpack.c.b16 %v360, %v360
  %v393 = vpack.c.b16 %v361, %v361
  %v394 = vpack.c.b16 %v362, %v362
  %v395 = vpack.c.b16 %v363, %v363
  %v396 = vpack.c.b16 %v364, %v364
  %v397 = vpack.c.b16 %v365, %v365
  %v398 = vpack.c.b16 %v366, %v366
  %v399 = vpack.c.b16 %v367, %v367
  %v400 = vpack.c.b16 %v368, %v368
  %v401 = vpack.c.b16 %v369, %v369
  %v402 = vpack.c.b16 %v370, %v370
  %v403 = vpack.c.b16 %v371, %v371
  %v404 = vpack.c.b16 %v372, %v372
  %v405 = vpack.c.b16 %v373, %v373
  %v694 = vunpack.c.l.b16 %v39
  %v695 = vunpack.c.l.b16 %v40
  %v696 = vunpack.c.l.b16 %v41
  %v697 = vunpack.c.l.b16 %v42
  %v698 = vunpack.c.l.b16 %v43
  %v699 = vunpack.c.l.b16 %v44
  %v700 = vunpack.c.l.b16 %v45
  %v701 = vunpack.c.l.b16 %v46
  %v702 = vunpack.c.l.b16 %v47
  %v703 = vunpack.c.l.b16 %v48
  %v704 = vunpack.c.l.b16 %v49
  %v705 = vunpack.c.l.b16 %v50
  %v706 = vunpack.c.l.b16 %v51
  %v707 = vunpack.c.l.b16 %v52
  %v708 = vunpack.c.l.b16 %v53
  %v709 = vunpack.c.l.b16 %v54
  %v710 = vunpack.c.l.b16 %v55
  %v711 = vunpack.c.l.b16 %v56
  %v712 = vunpack.c.l.b16 %v57
  %v713 = vunpack.c.l.b16 %v58
  %v714 = vunpack.c.l.b16 %v59
  %v715 = vunpack.c.l.b16 %v60
  %v716 = vunpack.c.l.b16 %v61
  %v717 = vunpack.c.l.b16 %v62
  %v718 = vunpack.c.l.b16 %v63
  %v719 = vunpack.c.l.b16 %v64
  %v720 = vunpack.c.l.b16 %v65
  %v721 = vunpack.c.l.b16 %v66
  %v722 = vunpack.c.l.b16 %v67
  %v723 = vunpack.c.l.b16 %v68
  %v724 = vunpack.c.l.b16 %v69
  %v725 = vunpack.c.l.b16 %v70
  %v726 = vunpack.c.l.b16 %v71
  %v727 = vunpack.c.l.b16 %v72
  %v728 = vunpack.c.l.b16 %v73
  %v729 = vunpack.c.l.b16 %v74
  %v730 = vunpack.c.l.b16 %v75
  %v731 = vunpack.c.l.b16 %v76
  %v732 = vunpack.c.l.b16 %v77
  %v733 = vunpack.c.l.b16 %v78
  %v734 = vunpack.c.l.b16 %v79
  %v735 = vunpack.c.l.b16 %v80
  %v736 = vunpack.c.l.b16 %v81
  %v737 = vunpack.c.l.b16 %v82
  %v738 = vunpack.c.l.b16 %v83
  %v739 = vunpack.c.l.b16 %v84
  %v740 = vunpack.c.l.b16 %v85
  %v741 = vunpack.c.l.b16 %v86
  %v742 = vunpack.c.l.b16 %v87
  %v743 = vunpack.c.l.b16 %v88
  %v744 = vunpack.c.l.b16 %v89
  %v745 = vunpack.c.l.b16 %v90
  %v746 = vunpack.c.l.b16 %v91
  %v747 = vunpack.c.l.b16 %v92
  %v748 = vunpack.c.l.b16 %v93
  %v749 = vunpack.c.l.b16 %v94
  %v750 = vunpack.c.l.b16 %v95
  %v751 = vunpack.c.l.b16 %v96
  %v752 = vunpack.c.l.b16 %v97
  %v753 = vunpack.c.l.b16 %v98
  %v754 = vunpack.c.l.b16 %v99
  %v755 = vunpack.c.l.b16 %v100
  %v756 = vunpack.c.l.b16 %v101
  %v757 = vunpack.c.l.b16 %v102
  %v758 = vunpack.c.l.b16 %v103
  %v759 = vunpack.c.l.b16 %v104
  %v760 = vunpack.c.l.b16 %v105
  %v761 = vunpack.c.l.b16 %v106
  %v762 = vunpack.c.l.b16 %v107
  %v763 = vunpack.c.l.b16 %v108
  %v764 = vunpack.c.l.b16 %v109
  %v765 = vunpack.c.l.b16 %v110
  %v766 = vunpack.c.l.b16 %v111
  %v767 = vunpack.c.l.b16 %v112
  %v768 = vunpack.c.l.b16 %v113
  %v769 = vunpack.c.l.b16 %v114
  %v770 = vunpack.c.l.b16 %v115
  %v771 = vunpack.c.l.b16 %v116
  %v772 = vunpack.c.l.b16 %v117
  %v773 = vunpack.c.l.b16 %v118
  %v774 = vunpack.c.l.b16 %v119
  %v775 = vunpack.c.l.b16 %v120
  %v776 = vunpack.c.l.b16 %v121
  %v777 = vunpack.c.l.b16 %v122
  %v778 = vunpack.c.l.b16 %v123
  %v779 = vunpack.c.l.b16 %v124
  %v780 = vunpack.c.l.b16 %v125
  %v781 = vunpack.c.l.b16 %v126
  %v782 = vunpack.c.l.b16 %v127
  %v783 = vunpack.c.l.b16 %v128
  %v784 = vunpack.c.l.b16 %v129
  %v785 = vunpack.c.l.b16 %v130
  %v786 = vunpack.c.l.b16 %v131
  %v787 = vunpack.c.l.b16 %v132
  %v788 = vunpack.c.l.b16 %v133
  %v789 = vunpack.c.l.b16 %v134
  %v790 = vunpack.c.l.b16 %v135
  %v791 = vunpack.c.l.b16 %v136
  %v792 = vunpack.c.l.b16 %v137
  %v793 = vunpack.c.l.b16 %v138
  %v794 = vunpack.c.l.b16 %v139
  %v795 = vunpack.c.l.b16 %v140
  %v796 = vunpack.c.l.b16 %v141
  %v797 = vunpack.c.l.b16 %v142
  %v798 = vunpack.c.l.b16 %v143
  %v799 = vunpack.c.l.b16 %v144
  %v800 = vunpack.c.l.b16 %v145
  %v801 = vunpack.c.l.b16 %v146
  %v802 = vunpack.c.l.b16 %v147
  %v803 = vunpack.c.l.b16 %v148
  %v804 = vunpack.c.l.b16 %v149
  %v805 = vunpack.c.l.b16 %v150
  %v806 = vunpack.c.l.b16 %v151
  %v807 = vunpack.c.l.b16 %v152
  %v808 = vunpack.c.l.b16 %v153
  %v809 = vunpack.c.l.b16 %v154
  %v810 = vunpack.c.l.b16 %v155
  %v811 = vunpack.c.l.b16 %v156
  %v812 = vunpack.c.l.b16 %v157
  %v813 = vunpack.c.l.b16 %v158
  %v814 = vunpack.c.l.b16 %v159
  %v815 = vunpack.c.l.b16 %v160
  %v816 = vunpack.c.l.b16 %v161
  %v817 = vunpack.c.l.b16 %v162
  %v818 = vunpack.c.l.b16 %v163
  %v819 = vunpack.c.l.b16 %v164
  %v820 = vunpack.c.l.b16 %v165
  %v821 = vunpack.c.l.b16 %v166
  %v822 = vunpack.c.l.b16 %v167
  %v823 = vunpack.c.l.b16 %v168
  %v824 = vunpack.c.l.b16 %v169
  %v825 = vunpack.c.l.b16 %v170
  %v826 = vunpack.c.l.b16 %v171
  %v827 = vunpack.c.l.b16 %v172
  %v828 = vunpack.c.l.b16 %v173
  %v829 = vunpack.c.l.b16 %v174
  %v830 = vunpack.c.l.b16 %v175
  %v831 = vunpack.c.l.b16 %v176
  %v832 = vunpack.c.l.b16 %v177
  %v833 = vunpack.c.l.b16 %v178
  %v834 = vunpack.c.l.b16 %v179
  %v835 = vunpack.c.l.b16 %v180
  %v836 = vunpack.c.l.b16 %v181
  %v837 = vunpack.c.l.b16 %v182
  %v838 = vunpack.c.l.b16 %v183
  %v839 = vunpack.c.l.b16 %v184
  %v840 = vunpack.c.l.b16 %v185
  %v841 = vunpack.c.l.b16 %v186
  %v842 = vunpack.c.l.b16 %v187
  %v843 = vunpack.c.l.b16 %v188
  %v844 = vunpack.c.l.b16 %v189
  %v845 = vunpack.c.l.b16 %v190
  %v846 = vunpack.c.l.b16 %v191
  %v847 = vunpack.c.l.b16 %v192
  %v848 = vunpack.c.l.b16 %v193
  %v849 = vunpack.c.l.b16 %v194
  %v850 = vunpack.c.l.b16 %v195
  %v851 = vunpack.c.l.b16 %v196
  %v852 = vunpack.c.l.b16 %v197
  %v853 = vunpack.c.l.b16 %v198
  %v854 = vunpack.c.l.b16 %v199
  %v855 = vunpack.c.l.b16 %v200
  %v856 = vunpack.c.l.b16 %v201
  %v857 = vunpack.c.l.b16 %v202
  %v858 = vunpack.c.l.b16 %v203
  %v859 = vunpack.c.l.b16 %v204
  %v860 = vunpack.c.l.b16 %v205
  %v861 = vunpack.c.l.b16 %v206
  %v862 = vunpack.c.l.b16 %v207
  %v863 = vunpack.c.l.b16 %v208
  %v864 = vunpack.c.l.b16 %v209
  %v865 = vunpack.c.l.b16 %v210
  %v866 = vunpack.c.l.b16 %v211
  %v867 = vunpack.c.l.b16 %v212
  %v868 = vunpack.c.l.b16 %v213
  %v869 = vunpack.c.l.b16 %v214
  %v870 = vunpack.c.l.b16 %v215
  %v871 = vunpack.c.l.b16 %v216
  %v872 = vunpack.c.l.b16 %v217
  %v873 = vunpack.c.l.b16 %v218
  %v874 = vunpack.c.l.b16 %v219
  %v875 = vunpack.c.l.b16 %v220
  %v876 = vunpack.c.l.b16 %v221
  %v877 = vunpack.c.l.b16 %v222
  %v878 = vunpack.c.l.b16 %v223
  %v879 = vunpack.c.l.b16 %v224
  %v880 = vunpack.c.l.b16 %v225
  %v881 = vunpack.c.l.b16 %v226
  %v882 = vunpack.c.l.b16 %v227
  %v883 = vunpack.c.l.b16 %v228
  %v884 = vunpack.c.l.b16 %v229
  %v885 = vunpack.c.l.b16 %v230
  %v886 = vunpack.c.l.b16 %v231
  %v887 = vunpack.c.l.b16 %v232
  %v888 = vunpack.c.l.b16 %v233
  %v889 = vunpack.c.l.b16 %v234
  %v890 = vunpack.c.l.b16 %v235
  %v891 = vunpack.c.l.b16 %v236
  %v892 = vunpack.c.l.b16 %v237
  %v893 = vunpack.c.l.b16 %v238
  %v894 = vunpack.c.l.b16 %v239
  %v895 = vunpack.c.l.b16 %v240
  %v896 = vunpack.c.l.b16 %v241
  %v897 = vunpack.c.l.b16 %v242
  %v898 = vunpack.c.l.b16 %v243
  %v899 = vunpack.c.l.b16 %v244
  %v900 = vunpack.c.l.b16 %v245
  %v901 = vunpack.c.l.b16 %v246
  %v902 = vunpack.c.l.b16 %v247
  %v903 = vunpack.c.l.b16 %v248
  %v904 = vunpack.c.l.b16 %v249
  %v905 = vunpack.c.l.b16 %v250
  %v906 = vunpack.c.l.b16 %v251
  %v907 = vunpack.c.l.b16 %v252
  %v908 = vunpack.c.l.b16 %v253
  %v909 = vunpack.c.l.b16 %v254
  %v910 = vunpack.c.l.b16 %v255
  %v911 = vunpack.c.l.b16 %v256
  %v912 = vunpack.c.l.b16 %v257
  %v913 = vunpack.c.l.b16 %v258
  %v914 = vunpack.c.l.b16 %v259
  %v915 = vunpack.c.l.b16 %v260
  %v916 = vunpack.c.l.b16 %v261
  %v917 = vunpack.c.l.b16 %v262
  %v918 = vunpack.c.l.b16 %v263
  %v919 = vunpack.c.l.b16 %v264
  %v920 = vunpack.c.l.b16 %v265
  %v921 = vunpack.c.l.b16 %v266
  %v922 = vunpack.c.l.b16 %v267
  %v923 = vunpack.c.l.b16 %v268
  %v924 = vunpack.c.l.b16 %v269
  %v925 = vunpack.c.l.b16 %v270
  %v926 = vunpack.c.l.b16 %v271
  %v927 = vunpack.c.l.b16 %v272
  %v928 = vunpack.c.l.b16 %v273
  %v929 = vunpack.c.l.b16 %v274
  %v930 = vunpack.c.l.b16 %v275
  %v931 = vunpack.c.l.b16 %v276
  %v932 = vunpack.c.l.b16 %v277
  %v933 = vunpack.c.l.b16 %v278
  %v934 = vunpack.c.l.b16 %v279
  %v935 = vunpack.c.l.b16 %v280
  %v936 = vunpack.c.l.b16 %v281
  %v937 = vunpack.c.l.b16 %v282
  %v938 = vunpack.c.l.b16 %v283
  %v939 = vunpack.c.l.b16 %v284
  %v940 = vunpack.c.l.b16 %v285
  %v941 = vunpack.c.l.b16 %v286
  %v942 = vunpack.c.l.b16 %v287
  %v943 = vunpack.c.l.b16 %v288
  %v944 = vunpack.c.l.b16 %v289
  %v945 = vunpack.c.l.b16 %v290
  %v946 = vunpack.c.l.b16 %v291
  %v947 = vunpack.c.l.b16 %v292
  %v948 = vunpack.c.l.b16 %v293
  %v949 = vunpack.c.l.b16 %v294
  %v950 = vpack.c.b16 %v695, %v694
  %v951 = vpack.c.b16 %v697, %v696
  %v952 = vpack.c.b16 %v699, %v698
  %v953 = vpack.c.b16 %v701, %v700
  %v954 = vpack.c.b16 %v703, %v702
  %v955 = vpack.c.b16 %v705, %v704
  %v956 = vpack.c.b16 %v707, %v706
  %v957 = vpack.c.b16 %v709, %v708
  %v958 = vpack.c.b16 %v711, %v710
  %v959 = vpack.c.b16 %v713, %v712
  %v960 = vpack.c.b16 %v715, %v714
  %v961 = vpack.c.b16 %v717, %v716
  %v962 = vpack.c.b16 %v719, %v718
  %v963 = vpack.c.b16 %v721, %v720
  %v964 = vpack.c.b16 %v723, %v722
  %v965 = vpack.c.b16 %v725, %v724
  %v966 = vpack.c.b16 %v727, %v726
  %v967 = vpack.c.b16 %v729, %v728
  %v968 = vpack.c.b16 %v731, %v730
  %v969 = vpack.c.b16 %v733, %v732
  %v970 = vpack.c.b16 %v735, %v734
  %v971 = vpack.c.b16 %v737, %v736
  %v972 = vpack.c.b16 %v739, %v738
  %v973 = vpack.c.b16 %v741, %v740
  %v974 = vpack.c.b16 %v743, %v742
  %v975 = vpack.c.b16 %v745, %v744
  %v976 = vpack.c.b16 %v747, %v746
  %v977 = vpack.c.b16 %v749, %v748
  %v978 = vpack.c.b16 %v751, %v750
  %v979 = vpack.c.b16 %v753, %v752
  %v980 = vpack.c.b16 %v755, %v754
  %v981 = vpack.c.b16 %v757, %v756
  %v982 = vpack.c.b16 %v759, %v758
  %v983 = vpack.c.b16 %v761, %v760
  %v984 = vpack.c.b16 %v763, %v762
  %v985 = vpack.c.b16 %v765, %v764
  %v986 = vpack.c.b16 %v767, %v766
  %v987 = vpack.c.b16 %v769, %v768
  %v988 = vpack.c.b16 %v771, %v770
  %v989 = vpack.c.b16 %v773, %v772
  %v990 = vpack.c.b16 %v775, %v774
  %v991 = vpack.c.b16 %v777, %v776
  %v992 = vpack.c.b16 %v779, %v778
  %v993 = vpack.c.b16 %v781, %v780
  %v994 = vpack.c.b16 %v783, %v782
  %v995 = vpack.c.b16 %v785, %v784
  %v996 = vpack.c.b16 %v787, %v786
  %v997 = vpack.c.b16 %v789, %v788
  %v998 = vpack.c.b16 %v791, %v790
  %v999 = vpack.c.b16 %v793, %v792
  %v1000 = vpack.c.b16 %v795, %v794
  %v1001 = vpack.c.b16 %v797, %v796
  %v1002 = vpack.c.b16 %v799, %v798
  %v1003 = vpack.c.b16 %v801, %v800
  %v1004 = vpack.c.b16 %v803, %v802
  %v1005 = vpack.c.b16 %v805, %v804
  %v1006 = vpack.c.b16 %v807, %v806
  %v1007 = vpack.c.b16 %v809, %v808
  %v1008 = vpack.c.b16 %v811, %v810
  %v1009 = vpack.c.b16 %v813, %v812
  %v1010 = vpack.c.b16 %v815, %v814
  %v1011 = vpack.c.b16 %v817, %v816
  %v1012 = vpack.c.b16 %v819, %v818
  %v1013 = vpack.c.b16 %v821, %v820
  %v1014 = vpack.c.b16 %v823, %v822
  %v1015 = vpack.c.b16 %v825, %v824
  %v1016 = vpack.c.b16 %v827, %v826
  %v1017 = vpack.c.b16 %v829, %v828
  %v1018 = vpack.c.b16 %v831, %v830
  %v1019 = vpack.c.b16 %v833, %v832
  %v1020 = vpack.c.b16 %v835, %v834
  %v1021 = vpack.c.b16 %v837, %v836
  %v1022 = vpack.c.b16 %v839, %v838
  %v1023 = vpack.c.b16 %v841, %v840
  %v1024 = vpack.c.b16 %v843, %v842
  %v1025 = vpack.c.b16 %v845, %v844
  %v1026 = vpack.c.b16 %v847, %v846
  %v1027 = vpack.c.b16 %v849, %v848
  %v1028 = vpack.c.b16 %v851, %v850
  %v1029 = vpack.c.b16 %v853, %v852
  %v1030 = vpack.c.b16 %v855, %v854
  %v1031 = vpack.c.b16 %v857, %v856
  %v1032 = vpack.c.b16 %v859, %v858
  %v1033 = vpack.c.b16 %v861, %v860
  %v1034 = vpack.c.b16 %v863, %v862
  %v1035 = vpack.c.b16 %v865, %v864
  %v1036 = vpack.c.b16 %v867, %v866
  %v1037 = vpack.c.b16 %v869, %v868
  %v1038 = vpack.c.b16 %v871, %v870
  %v1039 = vpack.c.b16 %v873, %v872
  %v1040 = vpack.c.b16 %v875, %v874
  %v1041 = vpack.c.b16 %v877, %v876
  %v1042 = vpack.c.b16 %v879, %v878
  %v1043 = vpack.c.b16 %v881, %v880
  %v1044 = vpack.c.b16 %v883, %v882
  %v1045 = vpack.c.b16 %v885, %v884
  %v1046 = vpack.c.b16 %v887, %v886
  %v1047 = vpack.c.b16 %v889, %v888
  %v1048 = vpack.c.b16 %v891, %v890
  %v1049 = vpack.c.b16 %v893, %v892
  %v1050 = vpack.c.b16 %v895, %v894
  %v1051 = vpack.c.b16 %v897, %v896
  %v1052 = vpack.c.b16 %v899, %v898
  %v1053 = vpack.c.b16 %v901, %v900
  %v1054 = vpack.c.b16 %v903, %v902
  %v1055 = vpack.c.b16 %v905, %v904
  %v1056 = vpack.c.b16 %v907, %v906
  %v1057 = vpack.c.b16 %v909, %v908
  %v1058 = vpack.c.b16 %v911, %v910
  %v1059 = vpack.c.b16 %v913, %v912
  %v1060 = vpack.c.b16 %v915, %v914
  %v1061 = vpack.c.b16 %v917, %v916
  %v1062 = vpack.c.b16 %v919, %v918
  %v1063 = vpack.c.b16 %v921, %v920
  %v1064 = vpack.c.b16 %v923, %v922
  %v1065 = vpack.c.b16 %v925, %v924
  %v1066 = vpack.c.b16 %v927, %v926
  %v1067 = vpack.c.b16 %v929, %v928
  %v1068 = vpack.c.b16 %v931, %v930
  %v1069 = vpack.c.b16 %v933, %v932
  %v1070 = vpack.c.b16 %v935, %v934
  %v1071 = vpack.c.b16 %v937, %v936
  %v1072 = vpack.c.b16 %v939, %v938
  %v1073 = vpack.c.b16 %v941, %v940
  %v1074 = vpack.c.b16 %v943, %v942
  %v1075 = vpack.c.b16 %v945, %v944
  %v1076 = vpack.c.b16 %v947, %v946
  %v1077 = vpack.c.b16 %v949, %v948
  %1206 = vmatprep.subr.bf16.mxu0 0
  %1207 = vmatpush1.bf16.msra.mxu0 %v950
  %1208 = vmatprep.subr.bf16.mxu0 0
  %1209 = vmatpush1.bf16.msra.mxu0 %v951
  %1210 = vmatprep.subr.bf16.mxu0 0
  %1211 = vmatpush1.bf16.msra.mxu0 %v952
  %1212 = vmatprep.subr.bf16.mxu0 0
  %1213 = vmatpush1.bf16.msra.mxu0 %v953
  %1214 = vmatprep.subr.bf16.mxu0 0
  %1215 = vmatpush1.bf16.msra.mxu0 %v954
  %1216 = vmatprep.subr.bf16.mxu0 0
  %1217 = vmatpush1.bf16.msra.mxu0 %v955
  %1218 = vmatprep.subr.bf16.mxu0 0
  %1219 = vmatpush1.bf16.msra.mxu0 %v956
  %1220 = vmatprep.subr.bf16.mxu0 0
  %1221 = vmatpush1.bf16.msra.mxu0 %v957
  %1222 = vmatprep.subr.bf16.mxu0 0
  %1223 = vmatpush1.bf16.msra.mxu0 %v958
  %1224 = vmatprep.subr.bf16.mxu0 0
  %1225 = vmatpush1.bf16.msra.mxu0 %v959
  %1226 = vmatprep.subr.bf16.mxu0 0
  %1227 = vmatpush1.bf16.msra.mxu0 %v960
  %1228 = vmatprep.subr.bf16.mxu0 0
  %1229 = vmatpush1.bf16.msra.mxu0 %v961
  %1230 = vmatprep.subr.bf16.mxu0 0
  %1231 = vmatpush1.bf16.msra.mxu0 %v962
  %1232 = vmatprep.subr.bf16.mxu0 0
  %1233 = vmatpush1.bf16.msra.mxu0 %v963
  %1234 = vmatprep.subr.bf16.mxu0 0
  %1235 = vmatpush1.bf16.msra.mxu0 %v964
  %1236 = vmatprep.subr.bf16.mxu0 0
  %1237 = vmatpush1.bf16.msra.mxu0 %v965
  %1238 = vmatprep.mubr.bf16.mxu0 %v375
  %1239 = vmatmul.mubr.bf16.gmra.mrb[0].mxu0 %v374
  %v1240 = vpop.f32.mrb[0].mxu0
  %v1241 = vadd.f32 %v300, %v1240
  %v1242 = vpop.f32.mrb[0].mxu0
  %v1243 = vpop.f32.mrb[0].mxu0
  %v1244 = vadd.f32 %v300, %v1243
  %v1245 = vpop.f32.mrb[0].mxu0
  %1246 = vmatprep.mubr.bf16.mxu0 %v391
  %1247 = vmatmul.mubr.bf16.gmra.mrb[0].mxu0 %v390
  %v1248 = vpop.f32.mrb[0].mxu0
  %v1249 = vadd.f32 %v300, %v1248
  %v1250 = vpop.f32.mrb[0].mxu0
  %v1251 = vpop.f32.mrb[0].mxu0
  %v1252 = vpop.f32.mrb[0].mxu0
  %1253 = vdwg.mxu0
  %1254 = vmatprep.subr.bf16.mxu0 0
  %1255 = vmatpush1.bf16.msra.mxu0 %v966
  %1256 = vmatprep.subr.bf16.mxu0 0
  %1257 = vmatpush1.bf16.msra.mxu0 %v967
  %1258 = vmatprep.subr.bf16.mxu0 0
  %1259 = vmatpush1.bf16.msra.mxu0 %v968
  %1260 = vmatprep.subr.bf16.mxu0 0
  %1261 = vmatpush1.bf16.msra.mxu0 %v969
  %1262 = vmatprep.subr.bf16.mxu0 0
  %1263 = vmatpush1.bf16.msra.mxu0 %v970
  %1264 = vmatprep.subr.bf16.mxu0 0
  %1265 = vmatpush1.bf16.msra.mxu0 %v971
  %1266 = vmatprep.subr.bf16.mxu0 0
  %1267 = vmatpush1.bf16.msra.mxu0 %v972
  %1268 = vmatprep.subr.bf16.mxu0 0
  %1269 = vmatpush1.bf16.msra.mxu0 %v973
  %1270 = vmatprep.subr.bf16.mxu0 0
  %1271 = vmatpush1.bf16.msra.mxu0 %v974
  %1272 = vmatprep.subr.bf16.mxu0 0
  %1273 = vmatpush1.bf16.msra.mxu0 %v975
  %1274 = vmatprep.subr.bf16.mxu0 0
  %1275 = vmatpush1.bf16.msra.mxu0 %v976
  %1276 = vmatprep.subr.bf16.mxu0 0
  %1277 = vmatpush1.bf16.msra.mxu0 %v977
  %1278 = vmatprep.subr.bf16.mxu0 0
  %1279 = vmatpush1.bf16.msra.mxu0 %v978
  %1280 = vmatprep.subr.bf16.mxu0 0
  %1281 = vmatpush1.bf16.msra.mxu0 %v979
  %1282 = vmatprep.subr.bf16.mxu0 0
  %1283 = vmatpush1.bf16.msra.mxu0 %v980
  %1284 = vmatprep.subr.bf16.mxu0 0
  %1285 = vmatpush1.bf16.msra.mxu0 %v981
  %1286 = vmatprep.mubr.bf16.mxu0 %v377
  %1287 = vmatmul.mubr.bf16.gmra.mrb[0].mxu0 %v376
  %v1288 = vpop.f32.mrb[0].mxu0
  %v1289 = vadd.f32 %v1241, %v1288
  %v1290 = vpop.f32.mrb[0].mxu0
  %v1291 = vpop.f32.mrb[0].mxu0
  %v1292 = vadd.f32 %v1244, %v1291
  %v1293 = vpop.f32.mrb[0].mxu0
  %1294 = vmatprep.mubr.bf16.mxu0 %v393
  %1295 = vmatmul.mubr.bf16.gmra.mrb[0].mxu0 %v392
  %v1296 = vpop.f32.mrb[0].mxu0
  %v1297 = vadd.f32 %v1249, %v1296
  %v1298 = vpop.f32.mrb[0].mxu0
  %v1299 = vpop.f32.mrb[0].mxu0
  %v1300 = vpop.f32.mrb[0].mxu0
  %1301 = vdwg.mxu0
  %1302 = vmatprep.subr.bf16.mxu0 0
  %1303 = vmatpush1.bf16.msra.mxu0 %v982
  %1304 = vmatprep.subr.bf16.mxu0 0
  %1305 = vmatpush1.bf16.msra.mxu0 %v983
  %1306 = vmatprep.subr.bf16.mxu0 0
  %1307 = vmatpush1.bf16.msra.mxu0 %v984
  %1308 = vmatprep.subr.bf16.mxu0 0
  %1309 = vmatpush1.bf16.msra.mxu0 %v985
  %1310 = vmatprep.subr.bf16.mxu0 0
  %1311 = vmatpush1.bf16.msra.mxu0 %v986
  %1312 = vmatprep.subr.bf16.mxu0 0
  %1313 = vmatpush1.bf16.msra.mxu0 %v987
  %1314 = vmatprep.subr.bf16.mxu0 0
  %1315 = vmatpush1.bf16.msra.mxu0 %v988
  %1316 = vmatprep.subr.bf16.mxu0 0
  %1317 = vmatpush1.bf16.msra.mxu0 %v989
  %1318 = vmatprep.subr.bf16.mxu0 0
  %1319 = vmatpush1.bf16.msra.mxu0 %v990
  %1320 = vmatprep.subr.bf16.mxu0 0
  %1321 = vmatpush1.bf16.msra.mxu0 %v991
  %1322 = vmatprep.subr.bf16.mxu0 0
  %1323 = vmatpush1.bf16.msra.mxu0 %v992
  %1324 = vmatprep.subr.bf16.mxu0 0
  %1325 = vmatpush1.bf16.msra.mxu0 %v993
  %1326 = vmatprep.subr.bf16.mxu0 0
  %1327 = vmatpush1.bf16.msra.mxu0 %v994
  %1328 = vmatprep.subr.bf16.mxu0 0
  %1329 = vmatpush1.bf16.msra.mxu0 %v995
  %1330 = vmatprep.subr.bf16.mxu0 0
  %1331 = vmatpush1.bf16.msra.mxu0 %v996
  %1332 = vmatprep.subr.bf16.mxu0 0
  %1333 = vmatpush1.bf16.msra.mxu0 %v997
  %1334 = vmatprep.mubr.bf16.mxu0 %v379
  %1335 = vmatmul.mubr.bf16.gmra.mrb[0].mxu0 %v378
  %v1336 = vpop.f32.mrb[0].mxu0
  %v1337 = vadd.f32 %v1289, %v1336
  %v1338 = vpop.f32.mrb[0].mxu0
  %v1339 = vpop.f32.mrb[0].mxu0
  %v1340 = vadd.f32 %v1292, %v1339
  %v1341 = vpop.f32.mrb[0].mxu0
  %1342 = vmatprep.mubr.bf16.mxu0 %v395
  %1343 = vmatmul.mubr.bf16.gmra.mrb[0].mxu0 %v394
  %v1344 = vpop.f32.mrb[0].mxu0
  %v1345 = vadd.f32 %v1297, %v1344
  %v1346 = vpop.f32.mrb[0].mxu0
  %v1347 = vpop.f32.mrb[0].mxu0
  %v1348 = vpop.f32.mrb[0].mxu0
  %1349 = vdwg.mxu0
  %1350 = vmatprep.subr.bf16.mxu0 0
  %1351 = vmatpush1.bf16.msra.mxu0 %v998
  %1352 = vmatprep.subr.bf16.mxu0 0
  %1353 = vmatpush1.bf16.msra.mxu0 %v999
  %1354 = vmatprep.subr.bf16.mxu0 0
  %1355 = vmatpush1.bf16.msra.mxu0 %v1000
  %1356 = vmatprep.subr.bf16.mxu0 0
  %1357 = vmatpush1.bf16.msra.mxu0 %v1001
  %1358 = vmatprep.subr.bf16.mxu0 0
  %1359 = vmatpush1.bf16.msra.mxu0 %v1002
  %1360 = vmatprep.subr.bf16.mxu0 0
  %1361 = vmatpush1.bf16.msra.mxu0 %v1003
  %1362 = vmatprep.subr.bf16.mxu0 0
  %1363 = vmatpush1.bf16.msra.mxu0 %v1004
  %1364 = vmatprep.subr.bf16.mxu0 0
  %1365 = vmatpush1.bf16.msra.mxu0 %v1005
  %1366 = vmatprep.subr.bf16.mxu0 0
  %1367 = vmatpush1.bf16.msra.mxu0 %v1006
  %1368 = vmatprep.subr.bf16.mxu0 0
  %1369 = vmatpush1.bf16.msra.mxu0 %v1007
  %1370 = vmatprep.subr.bf16.mxu0 0
  %1371 = vmatpush1.bf16.msra.mxu0 %v1008
  %1372 = vmatprep.subr.bf16.mxu0 0
  %1373 = vmatpush1.bf16.msra.mxu0 %v1009
  %1374 = vmatprep.subr.bf16.mxu0 0
  %1375 = vmatpush1.bf16.msra.mxu0 %v1010
  %1376 = vmatprep.subr.bf16.mxu0 0
  %1377 = vmatpush1.bf16.msra.mxu0 %v1011
  %1378 = vmatprep.subr.bf16.mxu0 0
  %1379 = vmatpush1.bf16.msra.mxu0 %v1012
  %1380 = vmatprep.subr.bf16.mxu0 0
  %1381 = vmatpush1.bf16.msra.mxu0 %v1013
  %1382 = vmatprep.mubr.bf16.mxu0 %v381
  %1383 = vmatmul.mubr.bf16.gmra.mrb[0].mxu0 %v380
  %v1384 = vpop.f32.mrb[0].mxu0
  %v1385 = vadd.f32 %v1337, %v1384
  %v1386 = vpop.f32.mrb[0].mxu0
  %v1387 = vpop.f32.mrb[0].mxu0
  %v1388 = vadd.f32 %v1340, %v1387
  %v1389 = vpop.f32.mrb[0].mxu0
  %1390 = vmatprep.mubr.bf16.mxu0 %v397
  %1391 = vmatmul.mubr.bf16.gmra.mrb[0].mxu0 %v396
  %v1392 = vpop.f32.mrb[0].mxu0
  %v1393 = vadd.f32 %v1345, %v1392
  %v1394 = vpop.f32.mrb[0].mxu0
  %v1395 = vpop.f32.mrb[0].mxu0
  %v1396 = vpop.f32.mrb[0].mxu0
  %1397 = vdwg.mxu0
  %1398 = vmatprep.subr.bf16.mxu0 0
  %1399 = vmatpush1.bf16.msra.mxu0 %v1014
  %1400 = vmatprep.subr.bf16.mxu0 0
  %1401 = vmatpush1.bf16.msra.mxu0 %v1015
  %1402 = vmatprep.subr.bf16.mxu0 0
  %1403 = vmatpush1.bf16.msra.mxu0 %v1016
  %1404 = vmatprep.subr.bf16.mxu0 0
  %1405 = vmatpush1.bf16.msra.mxu0 %v1017
  %1406 = vmatprep.subr.bf16.mxu0 0
  %1407 = vmatpush1.bf16.msra.mxu0 %v1018
  %1408 = vmatprep.subr.bf16.mxu0 0
  %1409 = vmatpush1.bf16.msra.mxu0 %v1019
  %1410 = vmatprep.subr.bf16.mxu0 0
  %1411 = vmatpush1.bf16.msra.mxu0 %v1020
  %1412 = vmatprep.subr.bf16.mxu0 0
  %1413 = vmatpush1.bf16.msra.mxu0 %v1021
  %1414 = vmatprep.subr.bf16.mxu0 0
  %1415 = vmatpush1.bf16.msra.mxu0 %v1022
  %1416 = vmatprep.subr.bf16.mxu0 0
  %1417 = vmatpush1.bf16.msra.mxu0 %v1023
  %1418 = vmatprep.subr.bf16.mxu0 0
  %1419 = vmatpush1.bf16.msra.mxu0 %v1024
  %1420 = vmatprep.subr.bf16.mxu0 0
  %1421 = vmatpush1.bf16.msra.mxu0 %v1025
  %1422 = vmatprep.subr.bf16.mxu0 0
  %1423 = vmatpush1.bf16.msra.mxu0 %v1026
  %1424 = vmatprep.subr.bf16.mxu0 0
  %1425 = vmatpush1.bf16.msra.mxu0 %v1027
  %1426 = vmatprep.subr.bf16.mxu0 0
  %1427 = vmatpush1.bf16.msra.mxu0 %v1028
  %1428 = vmatprep.subr.bf16.mxu0 0
  %1429 = vmatpush1.bf16.msra.mxu0 %v1029
  %1430 = vmatprep.mubr.bf16.mxu0 %v383
  %1431 = vmatmul.mubr.bf16.gmra.mrb[0].mxu0 %v382
  %v1432 = vpop.f32.mrb[0].mxu0
  %v1433 = vadd.f32 %v1385, %v1432
  %v1434 = vpop.f32.mrb[0].mxu0
  %v1435 = vpop.f32.mrb[0].mxu0
  %v1436 = vadd.f32 %v1388, %v1435
  %v1437 = vpop.f32.mrb[0].mxu0
  %1438 = vmatprep.mubr.bf16.mxu0 %v399
  %1439 = vmatmul.mubr.bf16.gmra.mrb[0].mxu0 %v398
  %v1440 = vpop.f32.mrb[0].mxu0
  %v1441 = vadd.f32 %v1393, %v1440
  %v1442 = vpop.f32.mrb[0].mxu0
  %v1443 = vpop.f32.mrb[0].mxu0
  %v1444 = vpop.f32.mrb[0].mxu0
  %1445 = vdwg.mxu0
  %1446 = vmatprep.subr.bf16.mxu0 0
  %1447 = vmatpush1.bf16.msra.mxu0 %v1030
  %1448 = vmatprep.subr.bf16.mxu0 0
  %1449 = vmatpush1.bf16.msra.mxu0 %v1031
  %1450 = vmatprep.subr.bf16.mxu0 0
  %1451 = vmatpush1.bf16.msra.mxu0 %v1032
  %1452 = vmatprep.subr.bf16.mxu0 0
  %1453 = vmatpush1.bf16.msra.mxu0 %v1033
  %1454 = vmatprep.subr.bf16.mxu0 0
  %1455 = vmatpush1.bf16.msra.mxu0 %v1034
  %1456 = vmatprep.subr.bf16.mxu0 0
  %1457 = vmatpush1.bf16.msra.mxu0 %v1035
  %1458 = vmatprep.subr.bf16.mxu0 0
  %1459 = vmatpush1.bf16.msra.mxu0 %v1036
  %1460 = vmatprep.subr.bf16.mxu0 0
  %1461 = vmatpush1.bf16.msra.mxu0 %v1037
  %1462 = vmatprep.subr.bf16.mxu0 0
  %1463 = vmatpush1.bf16.msra.mxu0 %v1038
  %1464 = vmatprep.subr.bf16.mxu0 0
  %1465 = vmatpush1.bf16.msra.mxu0 %v1039
  %1466 = vmatprep.subr.bf16.mxu0 0
  %1467 = vmatpush1.bf16.msra.mxu0 %v1040
  %1468 = vmatprep.subr.bf16.mxu0 0
  %1469 = vmatpush1.bf16.msra.mxu0 %v1041
  %1470 = vmatprep.subr.bf16.mxu0 0
  %1471 = vmatpush1.bf16.msra.mxu0 %v1042
  %1472 = vmatprep.subr.bf16.mxu0 0
  %1473 = vmatpush1.bf16.msra.mxu0 %v1043
  %1474 = vmatprep.subr.bf16.mxu0 0
  %1475 = vmatpush1.bf16.msra.mxu0 %v1044
  %1476 = vmatprep.subr.bf16.mxu0 0
  %1477 = vmatpush1.bf16.msra.mxu0 %v1045
  %1478 = vmatprep.mubr.bf16.mxu0 %v385
  %1479 = vmatmul.mubr.bf16.gmra.mrb[0].mxu0 %v384
  %v1480 = vpop.f32.mrb[0].mxu0
  %v1481 = vadd.f32 %v1433, %v1480
  %v1482 = vpop.f32.mrb[0].mxu0
  %v1483 = vpop.f32.mrb[0].mxu0
  %v1484 = vadd.f32 %v1436, %v1483
  %v1485 = vpop.f32.mrb[0].mxu0
  %1486 = vmatprep.mubr.bf16.mxu0 %v401
  %1487 = vmatmul.mubr.bf16.gmra.mrb[0].mxu0 %v400
  %v1488 = vpop.f32.mrb[0].mxu0
  %v1489 = vadd.f32 %v1441, %v1488
  %v1490 = vpop.f32.mrb[0].mxu0
  %v1491 = vpop.f32.mrb[0].mxu0
  %v1492 = vpop.f32.mrb[0].mxu0
  %1493 = vdwg.mxu0
  %1494 = vmatprep.subr.bf16.mxu0 0
  %1495 = vmatpush1.bf16.msra.mxu0 %v1046
  %1496 = vmatprep.subr.bf16.mxu0 0
  %1497 = vmatpush1.bf16.msra.mxu0 %v1047
  %1498 = vmatprep.subr.bf16.mxu0 0
  %1499 = vmatpush1.bf16.msra.mxu0 %v1048
  %1500 = vmatprep.subr.bf16.mxu0 0
  %1501 = vmatpush1.bf16.msra.mxu0 %v1049
  %1502 = vmatprep.subr.bf16.mxu0 0
  %1503 = vmatpush1.bf16.msra.mxu0 %v1050
  %1504 = vmatprep.subr.bf16.mxu0 0
  %1505 = vmatpush1.bf16.msra.mxu0 %v1051
  %1506 = vmatprep.subr.bf16.mxu0 0
  %1507 = vmatpush1.bf16.msra.mxu0 %v1052
  %1508 = vmatprep.subr.bf16.mxu0 0
  %1509 = vmatpush1.bf16.msra.mxu0 %v1053
  %1510 = vmatprep.subr.bf16.mxu0 0
  %1511 = vmatpush1.bf16.msra.mxu0 %v1054
  %1512 = vmatprep.subr.bf16.mxu0 0
  %1513 = vmatpush1.bf16.msra.mxu0 %v1055
  %1514 = vmatprep.subr.bf16.mxu0 0
  %1515 = vmatpush1.bf16.msra.mxu0 %v1056
  %1516 = vmatprep.subr.bf16.mxu0 0
  %1517 = vmatpush1.bf16.msra.mxu0 %v1057
  %1518 = vmatprep.subr.bf16.mxu0 0
  %1519 = vmatpush1.bf16.msra.mxu0 %v1058
  %1520 = vmatprep.subr.bf16.mxu0 0
  %1521 = vmatpush1.bf16.msra.mxu0 %v1059
  %1522 = vmatprep.subr.bf16.mxu0 0
  %1523 = vmatpush1.bf16.msra.mxu0 %v1060
  %1524 = vmatprep.subr.bf16.mxu0 0
  %1525 = vmatpush1.bf16.msra.mxu0 %v1061
  %1526 = vmatprep.mubr.bf16.mxu0 %v387
  %1527 = vmatmul.mubr.bf16.gmra.mrb[0].mxu0 %v386
  %v1528 = vpop.f32.mrb[0].mxu0
  %v1529 = vadd.f32 %v1481, %v1528
  %v1530 = vpop.f32.mrb[0].mxu0
  %v1531 = vpop.f32.mrb[0].mxu0
  %v1532 = vadd.f32 %v1484, %v1531
  %v1533 = vpop.f32.mrb[0].mxu0
  %1534 = vmatprep.mubr.bf16.mxu0 %v403
  %1535 = vmatmul.mubr.bf16.gmra.mrb[0].mxu0 %v402
  %v1536 = vpop.f32.mrb[0].mxu0
  %v1537 = vadd.f32 %v1489, %v1536
  %v1538 = vpop.f32.mrb[0].mxu0
  %v1539 = vpop.f32.mrb[0].mxu0
  %v1540 = vpop.f32.mrb[0].mxu0
  %1541 = vdwg.mxu0
  %1542 = vmatprep.subr.bf16.mxu0 0
  %1543 = vmatpush1.bf16.msra.mxu0 %v1062
  %1544 = vmatprep.subr.bf16.mxu0 0
  %1545 = vmatpush1.bf16.msra.mxu0 %v1063
  %1546 = vmatprep.subr.bf16.mxu0 0
  %1547 = vmatpush1.bf16.msra.mxu0 %v1064
  %1548 = vmatprep.subr.bf16.mxu0 0
  %1549 = vmatpush1.bf16.msra.mxu0 %v1065
  %1550 = vmatprep.subr.bf16.mxu0 0
  %1551 = vmatpush1.bf16.msra.mxu0 %v1066
  %1552 = vmatprep.subr.bf16.mxu0 0
  %1553 = vmatpush1.bf16.msra.mxu0 %v1067
  %1554 = vmatprep.subr.bf16.mxu0 0
  %1555 = vmatpush1.bf16.msra.mxu0 %v1068
  %1556 = vmatprep.subr.bf16.mxu0 0
  %1557 = vmatpush1.bf16.msra.mxu0 %v1069
  %1558 = vmatprep.subr.bf16.mxu0 0
  %1559 = vmatpush1.bf16.msra.mxu0 %v1070
  %1560 = vmatprep.subr.bf16.mxu0 0
  %1561 = vmatpush1.bf16.msra.mxu0 %v1071
  %1562 = vmatprep.subr.bf16.mxu0 0
  %1563 = vmatpush1.bf16.msra.mxu0 %v1072
  %1564 = vmatprep.subr.bf16.mxu0 0
  %1565 = vmatpush1.bf16.msra.mxu0 %v1073
  %1566 = vmatprep.subr.bf16.mxu0 0
  %1567 = vmatpush1.bf16.msra.mxu0 %v1074
  %1568 = vmatprep.subr.bf16.mxu0 0
  %1569 = vmatpush1.bf16.msra.mxu0 %v1075
  %1570 = vmatprep.subr.bf16.mxu0 0
  %1571 = vmatpush1.bf16.msra.mxu0 %v1076
  %1572 = vmatprep.subr.bf16.mxu0 0
  %1573 = vmatpush1.bf16.msra.mxu0 %v1077
  %1574 = vmatprep.mubr.bf16.mxu0 %v389
  %1575 = vmatmul.mubr.bf16.gmra.mrb[0].mxu0 %v388
  %v1576 = vpop.f32.mrb[0].mxu0
  %v1577 = vadd.f32 %v1529, %v1576
  %v1578 = vpop.f32.mrb[0].mxu0
  %v1579 = vpop.f32.mrb[0].mxu0
  %v1580 = vadd.f32 %v1532, %v1579
  %v1581 = vpop.f32.mrb[0].mxu0
  %1582 = vmatprep.mubr.bf16.mxu0 %v405
  %1583 = vmatmul.mubr.bf16.gmra.mrb[0].mxu0 %v404
  %v1584 = vpop.f32.mrb[0].mxu0
  %v1585 = vadd.f32 %v1537, %v1584
  %v1586 = vpop.f32.mrb[0].mxu0
  %v1587 = vpop.f32.mrb[0].mxu0
  %v1588 = vpop.f32.mrb[0].mxu0
  %1589 = vdwg.mxu0
  %v1590 = vmax.f32 %v1577, 0.0
  %v1591 = vmax.f32 %v1580, 0.0
  %v1592 = vmax.f32 %v1585, 0.0
  %v1593 = vpack.c.bf16 %v1591, %v1590
  %v1594 = vpack.c.bf16 %v1592, %v1592
  %v1597 = vunpack.c.l.b16 %v1593
  %v1598 = vunpack.c.h.b16 %v1593
  %v1599 = vunpack.c.l.b16 %v1594
  %v1600 = vpack.c.b16 %v1597, %v1597
  %v1601 = vpack.c.b16 %v1598, %v1598
  %v1602 = vpack.c.b16 %v1599, %v1599
  %1606 = vst [vmem:[%s3] sm:$0xf] %v1600
  %1607 = vst [vmem:[%s3 + $0x4] sm:$0xf] %v1601
  %1608 = vst [vmem:[%s3 + $0x8] sm:$0x1] %v1602
  // Predicated region
  $region14: #{actor_critic_forward.4} parent=0 // pred_check
    _
  $region15: #{actor_critic_forward.4} parent=0 // pred_check_branch
    %1610 = sbr.rel (0) target = $region17
  $region16: #{actor_critic_forward.4} parent=0 // pred_region
    _
  $region17: #{actor_critic_forward.4} parent=0 // pred_fallthru
    _
  // Predicated region
  $region18: #{actor_critic_forward.4} parent=0 // pred_check
    _
  $region19: #{actor_critic_forward.4} parent=0 // pred_check_branch
    %1612 = sbr.rel (0) target = $region21
  $region20: #{actor_critic_forward.4} parent=0 // pred_region
    _
  $region21: #{actor_critic_forward.4} parent=0 // pred_fallthru
    _

// kernel: actor_critic_forward.5
$region0: #{actor_critic_forward.5}
  #allocation0 [shape = 'u32[]', space=smem, size = 0x4, offset = 0x4, fixed_abs, tag = 'smem constant byte address 0x4 - core index']
  #allocation1 [shape = 'u32[144,128]{1,0:T(1,128)}', space=vmem, size = 0x12000, scoped, tag = 'internal scratch']
  %s0 = inlined_call_operand.vmem [shape: bf16[2,1152], index: 0, kind: input, shape index: {}]
  %s1 = inlined_call_operand.vmem [shape: bf16[1152,128], index: 1, kind: input, shape index: {}]
  %s2 = inlined_call_operand.vmem [shape: f32[1,128], index: 2, kind: input, shape index: {}]
  %s3 = inlined_call_operand.vmem [shape: bf16[128,512], index: 3, kind: input, shape index: {}]
  %s4 = inlined_call_operand.vmem [shape: f32[1,512], index: 4, kind: input, shape index: {}]
  %s5 = inlined_call_operand.vmem [shape: bf16[512,128], index: 5, kind: input, shape index: {}]
  %s6 = inlined_call_operand.vmem [shape: f32[1,128], index: 6, kind: input, shape index: {}]
  %s7 = inlined_call_operand.vmem [shape: f32[2,128], index: 7, kind: output, shape index: {}]
  %s8 = sld [smem:[#allocation0]]
  $region38: #{actor_critic_forward.5} parent=0
    _
  %s10 = ssub.s32 1, %s8
  %s11 = scalar_select 0, %s10, %s8
  // Predicated region
  $region2: #{actor_critic_forward.5} parent=0 // pred_check
    _
  $region3: #{actor_critic_forward.5} parent=0 // pred_check_branch
    %13 = sbr.rel (0) target = $region5
  $region4: #{actor_critic_forward.5} parent=0 // pred_region
    _
  $region5: #{actor_critic_forward.5} parent=0 // pred_fallthru
    _
  // Predicated region
  $region6: #{actor_critic_forward.5} parent=0 // pred_check
    _
  $region7: #{actor_critic_forward.5} parent=0 // pred_check_branch
    %15 = sbr.rel (0) target = $region9
  $region8: #{actor_critic_forward.5} parent=0 // pred_region
    _
  $region9: #{actor_critic_forward.5} parent=0 // pred_fallthru
    _
  // Predicated region
  $region10: #{actor_critic_forward.5} parent=0 // pred_check
    _
  $region11: #{actor_critic_forward.5} parent=0 // pred_check_branch
    %17 = sbr.rel (0) target = $region13
  $region12: #{actor_critic_forward.5} parent=0 // pred_region
    _
  $region13: #{actor_critic_forward.5} parent=0 // pred_fallthru
    _
  // Predicated region
  $region14: #{actor_critic_forward.5} parent=0 // pred_check
    _
  $region15: #{actor_critic_forward.5} parent=0 // pred_check_branch
    %19 = sbr.rel (0) target = $region17
  $region16: #{actor_critic_forward.5} parent=0 // pred_region
    _
  $region17: #{actor_critic_forward.5} parent=0 // pred_fallthru
    _
  // Predicated region
  $region18: #{actor_critic_forward.5} parent=0 // pred_check
    _
  $region19: #{actor_critic_forward.5} parent=0 // pred_check_branch
    %21 = sbr.rel (0) target = $region21
  $region20: #{actor_critic_forward.5} parent=0 // pred_region
    _
  $region21: #{actor_critic_forward.5} parent=0 // pred_fallthru
    _
  // Predicated region
  $region22: #{actor_critic_forward.5} parent=0 // pred_check
    _
  $region23: #{actor_critic_forward.5} parent=0 // pred_check_branch
    %23 = sbr.rel (0) target = $region25
  $region24: #{actor_critic_forward.5} parent=0 // pred_region
    _
  $region25: #{actor_critic_forward.5} parent=0 // pred_fallthru
    _
  // Predicated region
  $region26: #{actor_critic_forward.5} parent=0 // pred_check
    _
  $region27: #{actor_critic_forward.5} parent=0 // pred_check_branch
    %25 = sbr.rel (0) target = $region29
  $region28: #{actor_critic_forward.5} parent=0 // pred_region
    _
  $region29: #{actor_critic_forward.5} parent=0 // pred_fallthru
    _
  %v27 = vld [vmem:[%s0] sm:$0xff]
  %v28 = vld [vmem:[%s0 + $0x8] sm:$0x1]
  %v29 = vld [vmem:[%s1] sm:$0xf]
  %v30 = vld [vmem:[%s1 + $0x4] sm:$0xf]
  %v31 = vld [vmem:[%s1 + $0x8] sm:$0xf]
  %v32 = vld [vmem:[%s1 + $0xc] sm:$0xf]
  %v33 = vld [vmem:[%s1 + $0x10] sm:$0xf]
  %v34 = vld [vmem:[%s1 + $0x14] sm:$0xf]
  %v35 = vld [vmem:[%s1 + $0x18] sm:$0xf]
  %v36 = vld [vmem:[%s1 + $0x1c] sm:$0xf]
  %v37 = vld [vmem:[%s1 + $0x20] sm:$0xf]
  %v38 = vld [vmem:[%s1 + $0x24] sm:$0xf]
  %v39 = vld [vmem:[%s1 + $0x28] sm:$0xf]
  %v40 = vld [vmem:[%s1 + $0x2c] sm:$0xf]
  %v41 = vld [vmem:[%s1 + $0x30] sm:$0xf]
  %v42 = vld [vmem:[%s1 + $0x34] sm:$0xf]
  %v43 = vld [vmem:[%s1 + $0x38] sm:$0xf]
  %v44 = vld [vmem:[%s1 + $0x3c] sm:$0xf]
  %v45 = vld [vmem:[%s1 + $0x40] sm:$0xf]
  %v46 = vld [vmem:[%s1 + $0x44] sm:$0xf]
  %v47 = vld [vmem:[%s1 + $0x48] sm:$0xf]
  %v48 = vld [vmem:[%s1 + $0x4c] sm:$0xf]
  %v49 = vld [vmem:[%s1 + $0x50] sm:$0xf]
  %v50 = vld [vmem:[%s1 + $0x54] sm:$0xf]
  %v51 = vld [vmem:[%s1 + $0x58] sm:$0xf]
  %v52 = vld [vmem:[%s1 + $0x5c] sm:$0xf]
  %v53 = vld [vmem:[%s1 + $0x60] sm:$0xf]
  %v54 = vld [vmem:[%s1 + $0x64] sm:$0xf]
  %v55 = vld [vmem:[%s1 + $0x68] sm:$0xf]
  %v56 = vld [vmem:[%s1 + $0x6c] sm:$0xf]
  %v57 = vld [vmem:[%s1 + $0x70] sm:$0xf]
  %v58 = vld [vmem:[%s1 + $0x74] sm:$0xf]
  %v59 = vld [vmem:[%s1 + $0x78] sm:$0xf]
  %v60 = vld [vmem:[%s1 + $0x7c] sm:$0xf]
  %v61 = vld [vmem:[%s1 + $0x80] sm:$0xf]
  %v62 = vld [vmem:[%s1 + $0x84] sm:$0xf]
  %v63 = vld [vmem:[%s1 + $0x88] sm:$0xf]
  %v64 = vld [vmem:[%s1 + $0x8c] sm:$0xf]
  %v65 = vld [vmem:[%s1 + $0x90] sm:$0xf]
  %v66 = vld [vmem:[%s1 + $0x94] sm:$0xf]
  %v67 = vld [vmem:[%s1 + $0x98] sm:$0xf]
  %v68 = vld [vmem:[%s1 + $0x9c] sm:$0xf]
  %v69 = vld [vmem:[%s1 + $0xa0] sm:$0xf]
  %v70 = vld [vmem:[%s1 + $0xa4] sm:$0xf]
  %v71 = vld [vmem:[%s1 + $0xa8] sm:$0xf]
  %v72 = vld [vmem:[%s1 + $0xac] sm:$0xf]
  %v73 = vld [vmem:[%s1 + $0xb0] sm:$0xf]
  %v74 = vld [vmem:[%s1 + $0xb4] sm:$0xf]
  %v75 = vld [vmem:[%s1 + $0xb8] sm:$0xf]
  %v76 = vld [vmem:[%s1 + $0xbc] sm:$0xf]
  %v77 = vld [vmem:[%s1 + $0xc0] sm:$0xf]
  %v78 = vld [vmem:[%s1 + $0xc4] sm:$0xf]
  %v79 = vld [vmem:[%s1 + $0xc8] sm:$0xf]
  %v80 = vld [vmem:[%s1 + $0xcc] sm:$0xf]
  %v81 = vld [vmem:[%s1 + $0xd0] sm:$0xf]
  %v82 = vld [vmem:[%s1 + $0xd4] sm:$0xf]
  %v83 = vld [vmem:[%s1 + $0xd8] sm:$0xf]
  %v84 = vld [vmem:[%s1 + $0xdc] sm:$0xf]
  %v85 = vld [vmem:[%s1 + $0xe0] sm:$0xf]
  %v86 = vld [vmem:[%s1 + $0xe4] sm:$0xf]
  %v87 = vld [vmem:[%s1 + $0xe8] sm:$0xf]
  %v88 = vld [vmem:[%s1 + $0xec] sm:$0xf]
  %v89 = vld [vmem:[%s1 + $0xf0] sm:$0xf]
  %v90 = vld [vmem:[%s1 + $0xf4] sm:$0xf]
  %v91 = vld [vmem:[%s1 + $0xf8] sm:$0xf]
  %v92 = vld [vmem:[%s1 + $0xfc] sm:$0xf]
  %v93 = vld [vmem:[%s1 + $0x100] sm:$0xf]
  %v94 = vld [vmem:[%s1 + $0x104] sm:$0xf]
  %v95 = vld [vmem:[%s1 + $0x108] sm:$0xf]
  %v96 = vld [vmem:[%s1 + $0x10c] sm:$0xf]
  %v97 = vld [vmem:[%s1 + $0x110] sm:$0xf]
  %v98 = vld [vmem:[%s1 + $0x114] sm:$0xf]
  %v99 = vld [vmem:[%s1 + $0x118] sm:$0xf]
  %v100 = vld [vmem:[%s1 + $0x11c] sm:$0xf]
  %v101 = vld [vmem:[%s1 + $0x120] sm:$0xf]
  %v102 = vld [vmem:[%s1 + $0x124] sm:$0xf]
  %v103 = vld [vmem:[%s1 + $0x128] sm:$0xf]
  %v104 = vld [vmem:[%s1 + $0x12c] sm:$0xf]
  %v105 = vld [vmem:[%s1 + $0x130] sm:$0xf]
  %v106 = vld [vmem:[%s1 + $0x134] sm:$0xf]
  %v107 = vld [vmem:[%s1 + $0x138] sm:$0xf]
  %v108 = vld [vmem:[%s1 + $0x13c] sm:$0xf]
  %v109 = vld [vmem:[%s1 + $0x140] sm:$0xf]
  %v110 = vld [vmem:[%s1 + $0x144] sm:$0xf]
  %v111 = vld [vmem:[%s1 + $0x148] sm:$0xf]
  %v112 = vld [vmem:[%s1 + $0x14c] sm:$0xf]
  %v113 = vld [vmem:[%s1 + $0x150] sm:$0xf]
  %v114 = vld [vmem:[%s1 + $0x154] sm:$0xf]
  %v115 = vld [vmem:[%s1 + $0x158] sm:$0xf]
  %v116 = vld [vmem:[%s1 + $0x15c] sm:$0xf]
  %v117 = vld [vmem:[%s1 + $0x160] sm:$0xf]
  %v118 = vld [vmem:[%s1 + $0x164] sm:$0xf]
  %v119 = vld [vmem:[%s1 + $0x168] sm:$0xf]
  %v120 = vld [vmem:[%s1 + $0x16c] sm:$0xf]
  %v121 = vld [vmem:[%s1 + $0x170] sm:$0xf]
  %v122 = vld [vmem:[%s1 + $0x174] sm:$0xf]
  %v123 = vld [vmem:[%s1 + $0x178] sm:$0xf]
  %v124 = vld [vmem:[%s1 + $0x17c] sm:$0xf]
  %v125 = vld [vmem:[%s1 + $0x180] sm:$0xf]
  %v126 = vld [vmem:[%s1 + $0x184] sm:$0xf]
  %v127 = vld [vmem:[%s1 + $0x188] sm:$0xf]
  %v128 = vld [vmem:[%s1 + $0x18c] sm:$0xf]
  %v129 = vld [vmem:[%s1 + $0x190] sm:$0xf]
  %v130 = vld [vmem:[%s1 + $0x194] sm:$0xf]
  %v131 = vld [vmem:[%s1 + $0x198] sm:$0xf]
  %v132 = vld [vmem:[%s1 + $0x19c] sm:$0xf]
  %v133 = vld [vmem:[%s1 + $0x1a0] sm:$0xf]
  %v134 = vld [vmem:[%s1 + $0x1a4] sm:$0xf]
  %v135 = vld [vmem:[%s1 + $0x1a8] sm:$0xf]
  %v136 = vld [vmem:[%s1 + $0x1ac] sm:$0xf]
  %v137 = vld [vmem:[%s1 + $0x1b0] sm:$0xf]
  %v138 = vld [vmem:[%s1 + $0x1b4] sm:$0xf]
  %v139 = vld [vmem:[%s1 + $0x1b8] sm:$0xf]
  %v140 = vld [vmem:[%s1 + $0x1bc] sm:$0xf]
  %v141 = vld [vmem:[%s1 + $0x1c0] sm:$0xf]
  %v142 = vld [vmem:[%s1 + $0x1c4] sm:$0xf]
  %v143 = vld [vmem:[%s1 + $0x1c8] sm:$0xf]
  %v144 = vld [vmem:[%s1 + $0x1cc] sm:$0xf]
  %v145 = vld [vmem:[%s1 + $0x1d0] sm:$0xf]
  %v146 = vld [vmem:[%s1 + $0x1d4] sm:$0xf]
  %v147 = vld [vmem:[%s1 + $0x1d8] sm:$0xf]
  %v148 = vld [vmem:[%s1 + $0x1dc] sm:$0xf]
  %v149 = vld [vmem:[%s1 + $0x1e0] sm:$0xf]
  %v150 = vld [vmem:[%s1 + $0x1e4] sm:$0xf]
  %v151 = vld [vmem:[%s1 + $0x1e8] sm:$0xf]
  %v152 = vld [vmem:[%s1 + $0x1ec] sm:$0xf]
  %v153 = vld [vmem:[%s1 + $0x1f0] sm:$0xf]
  %v154 = vld [vmem:[%s1 + $0x1f4] sm:$0xf]
  %v155 = vld [vmem:[%s1 + $0x1f8] sm:$0xf]
  %v156 = vld [vmem:[%s1 + $0x1fc] sm:$0xf]
  %v157 = vld [vmem:[%s1 + $0x200] sm:$0xf]
  %v158 = vld [vmem:[%s1 + $0x204] sm:$0xf]
  %v159 = vld [vmem:[%s1 + $0x208] sm:$0xf]
  %v160 = vld [vmem:[%s1 + $0x20c] sm:$0xf]
  %v161 = vld [vmem:[%s1 + $0x210] sm:$0xf]
  %v162 = vld [vmem:[%s1 + $0x214] sm:$0xf]
  %v163 = vld [vmem:[%s1 + $0x218] sm:$0xf]
  %v164 = vld [vmem:[%s1 + $0x21c] sm:$0xf]
  %v165 = vld [vmem:[%s1 + $0x220] sm:$0xf]
  %v166 = vld [vmem:[%s1 + $0x224] sm:$0xf]
  %v167 = vld [vmem:[%s1 + $0x228] sm:$0xf]
  %v168 = vld [vmem:[%s1 + $0x22c] sm:$0xf]
  %v169 = vld [vmem:[%s1 + $0x230] sm:$0xf]
  %v170 = vld [vmem:[%s1 + $0x234] sm:$0xf]
  %v171 = vld [vmem:[%s1 + $0x238] sm:$0xf]
  %v172 = vld [vmem:[%s1 + $0x23c] sm:$0xf]
  %v173 = vld [vmem:[%s2] sm:$0x1]
  %v175 = vlaneseq
  %v176 = vshrl.u32 %v175, 7
  %v177 = vsub.s32 0, %v176
  %v178 = vrot.slane %v173, %v177
  %v182 = vcombine.high %v27, %v27
  %v184 = vunpack.c.l.s4 1966171168
  %v185 = vunpack.c.0.s8 %v184
  %v186 = vlaneseq
  %v187 = vshrl.u32 %v186, 7
  %v188 = vsub.s32 %v185, %v187
  %v189 = vrot.slane %v27, %v188
  %v191 = vunpack.c.l.s4 1966171168
  %v192 = vunpack.c.0.s8 %v191
  %v193 = vlaneseq
  %v194 = vshrl.u32 %v193, 7
  %v195 = vsub.s32 %v192, %v194
  %v196 = vrot.slane %v182, %v195
  %v197 = vcombine.high %v189, %v189
  %v198 = vcombine.high %v196, %v196
  %v200 = vunpack.c.l.s4 1966171168
  %v201 = vunpack.c.0.s8 %v200
  %v202 = vlaneseq
  %v203 = vshrl.u32 %v202, 7
  %v204 = vsub.s32 %v201, %v203
  %v205 = vrot.slane %v189, %v204
  %v207 = vunpack.c.l.s4 1966171168
  %v208 = vunpack.c.0.s8 %v207
  %v209 = vlaneseq
  %v210 = vshrl.u32 %v209, 7
  %v211 = vsub.s32 %v208, %v210
  %v212 = vrot.slane %v196, %v211
  %v214 = vunpack.c.l.s4 1966171168
  %v215 = vunpack.c.0.s8 %v214
  %v216 = vlaneseq
  %v217 = vshrl.u32 %v216, 7
  %v218 = vsub.s32 %v215, %v217
  %v219 = vrot.slane %v197, %v218
  %v221 = vunpack.c.l.s4 1966171168
  %v222 = vunpack.c.0.s8 %v221
  %v223 = vlaneseq
  %v224 = vshrl.u32 %v223, 7
  %v225 = vsub.s32 %v222, %v224
  %v226 = vrot.slane %v198, %v225
  %v227 = vcombine.high %v205, %v205
  %v228 = vcombine.high %v212, %v212
  %v229 = vcombine.high %v219, %v219
  %v230 = vcombine.high %v226, %v226
  %v232 = vunpack.c.l.s4 1966171168
  %v233 = vunpack.c.0.s8 %v232
  %v234 = vlaneseq
  %v235 = vshrl.u32 %v234, 7
  %v236 = vsub.s32 %v233, %v235
  %v237 = vrot.slane %v28, %v236
  %v239 = vunpack.c.l.s4 1966171168
  %v240 = vunpack.c.0.s8 %v239
  %v241 = vlaneseq
  %v242 = vshrl.u32 %v241, 7
  %v243 = vsub.s32 %v240, %v242
  %v244 = vrot.slane %v237, %v243
  %v398 = vunpack.c.l.b16 %v29
  %v399 = vunpack.c.l.b16 %v30
  %v400 = vunpack.c.l.b16 %v31
  %v401 = vunpack.c.l.b16 %v32
  %v402 = vunpack.c.l.b16 %v33
  %v403 = vunpack.c.l.b16 %v34
  %v404 = vunpack.c.l.b16 %v35
  %v405 = vunpack.c.l.b16 %v36
  %v406 = vunpack.c.l.b16 %v37
  %v407 = vunpack.c.l.b16 %v38
  %v408 = vunpack.c.l.b16 %v39
  %v409 = vunpack.c.l.b16 %v40
  %v410 = vunpack.c.l.b16 %v41
  %v411 = vunpack.c.l.b16 %v42
  %v412 = vunpack.c.l.b16 %v43
  %v413 = vunpack.c.l.b16 %v44
  %v414 = vunpack.c.l.b16 %v45
  %v415 = vunpack.c.l.b16 %v46
  %v416 = vunpack.c.l.b16 %v47
  %v417 = vunpack.c.l.b16 %v48
  %v418 = vunpack.c.l.b16 %v49
  %v419 = vunpack.c.l.b16 %v50
  %v420 = vunpack.c.l.b16 %v51
  %v421 = vunpack.c.l.b16 %v52
  %v422 = vunpack.c.l.b16 %v53
  %v423 = vunpack.c.l.b16 %v54
  %v424 = vunpack.c.l.b16 %v55
  %v425 = vunpack.c.l.b16 %v56
  %v426 = vunpack.c.l.b16 %v57
  %v427 = vunpack.c.l.b16 %v58
  %v428 = vunpack.c.l.b16 %v59
  %v429 = vunpack.c.l.b16 %v60
  %v430 = vunpack.c.l.b16 %v61
  %v431 = vunpack.c.l.b16 %v62
  %v432 = vunpack.c.l.b16 %v63
  %v433 = vunpack.c.l.b16 %v64
  %v434 = vunpack.c.l.b16 %v65
  %v435 = vunpack.c.l.b16 %v66
  %v436 = vunpack.c.l.b16 %v67
  %v437 = vunpack.c.l.b16 %v68
  %v438 = vunpack.c.l.b16 %v69
  %v439 = vunpack.c.l.b16 %v70
  %v440 = vunpack.c.l.b16 %v71
  %v441 = vunpack.c.l.b16 %v72
  %v442 = vunpack.c.l.b16 %v73
  %v443 = vunpack.c.l.b16 %v74
  %v444 = vunpack.c.l.b16 %v75
  %v445 = vunpack.c.l.b16 %v76
  %v446 = vunpack.c.l.b16 %v77
  %v447 = vunpack.c.l.b16 %v78
  %v448 = vunpack.c.l.b16 %v79
  %v449 = vunpack.c.l.b16 %v80
  %v450 = vunpack.c.l.b16 %v81
  %v451 = vunpack.c.l.b16 %v82
  %v452 = vunpack.c.l.b16 %v83
  %v453 = vunpack.c.l.b16 %v84
  %v454 = vunpack.c.l.b16 %v85
  %v455 = vunpack.c.l.b16 %v86
  %v456 = vunpack.c.l.b16 %v87
  %v457 = vunpack.c.l.b16 %v88
  %v458 = vunpack.c.l.b16 %v89
  %v459 = vunpack.c.l.b16 %v90
  %v460 = vunpack.c.l.b16 %v91
  %v461 = vunpack.c.l.b16 %v92
  %v462 = vunpack.c.l.b16 %v93
  %v463 = vunpack.c.l.b16 %v94
  %v464 = vunpack.c.l.b16 %v95
  %v465 = vunpack.c.l.b16 %v96
  %v466 = vunpack.c.l.b16 %v97
  %v467 = vunpack.c.l.b16 %v98
  %v468 = vunpack.c.l.b16 %v99
  %v469 = vunpack.c.l.b16 %v100
  %v470 = vunpack.c.l.b16 %v101
  %v471 = vunpack.c.l.b16 %v102
  %v472 = vunpack.c.l.b16 %v103
  %v473 = vunpack.c.l.b16 %v104
  %v474 = vunpack.c.l.b16 %v105
  %v475 = vunpack.c.l.b16 %v106
  %v476 = vunpack.c.l.b16 %v107
  %v477 = vunpack.c.l.b16 %v108
  %v478 = vunpack.c.l.b16 %v109
  %v479 = vunpack.c.l.b16 %v110
  %v480 = vunpack.c.l.b16 %v111
  %v481 = vunpack.c.l.b16 %v112
  %v482 = vunpack.c.l.b16 %v113
  %v483 = vunpack.c.l.b16 %v114
  %v484 = vunpack.c.l.b16 %v115
  %v485 = vunpack.c.l.b16 %v116
  %v486 = vunpack.c.l.b16 %v117
  %v487 = vunpack.c.l.b16 %v118
  %v488 = vunpack.c.l.b16 %v119
  %v489 = vunpack.c.l.b16 %v120
  %v490 = vunpack.c.l.b16 %v121
  %v491 = vunpack.c.l.b16 %v122
  %v492 = vunpack.c.l.b16 %v123
  %v493 = vunpack.c.l.b16 %v124
  %v494 = vunpack.c.l.b16 %v125
  %v495 = vunpack.c.l.b16 %v126
  %v496 = vunpack.c.l.b16 %v127
  %v497 = vunpack.c.l.b16 %v128
  %v498 = vunpack.c.l.b16 %v129
  %v499 = vunpack.c.l.b16 %v130
  %v500 = vunpack.c.l.b16 %v131
  %v501 = vunpack.c.l.b16 %v132
  %v502 = vunpack.c.l.b16 %v133
  %v503 = vunpack.c.l.b16 %v134
  %v504 = vunpack.c.l.b16 %v135
  %v505 = vunpack.c.l.b16 %v136
  %v506 = vunpack.c.l.b16 %v137
  %v507 = vunpack.c.l.b16 %v138
  %v508 = vunpack.c.l.b16 %v139
  %v509 = vunpack.c.l.b16 %v140
  %v510 = vunpack.c.l.b16 %v141
  %v511 = vunpack.c.l.b16 %v142
  %v512 = vunpack.c.l.b16 %v143
  %v513 = vunpack.c.l.b16 %v144
  %v514 = vunpack.c.l.b16 %v145
  %v515 = vunpack.c.l.b16 %v146
  %v516 = vunpack.c.l.b16 %v147
  %v517 = vunpack.c.l.b16 %v148
  %v518 = vunpack.c.l.b16 %v149
  %v519 = vunpack.c.l.b16 %v150
  %v520 = vunpack.c.l.b16 %v151
  %v521 = vunpack.c.l.b16 %v152
  %v522 = vunpack.c.l.b16 %v153
  %v523 = vunpack.c.l.b16 %v154
  %v524 = vunpack.c.l.b16 %v155
  %v525 = vunpack.c.l.b16 %v156
  %v526 = vunpack.c.l.b16 %v157
  %v527 = vunpack.c.l.b16 %v158
  %v528 = vunpack.c.l.b16 %v159
  %v529 = vunpack.c.l.b16 %v160
  %v530 = vunpack.c.l.b16 %v161
  %v531 = vunpack.c.l.b16 %v162
  %v532 = vunpack.c.l.b16 %v163
  %v533 = vunpack.c.l.b16 %v164
  %v534 = vunpack.c.l.b16 %v165
  %v535 = vunpack.c.l.b16 %v166
  %v536 = vunpack.c.l.b16 %v167
  %v537 = vunpack.c.l.b16 %v168
  %v538 = vunpack.c.l.b16 %v169
  %v539 = vunpack.c.l.b16 %v170
  %v540 = vunpack.c.l.b16 %v171
  %v541 = vunpack.c.l.b16 %v172
  %v542 = vpack.c.b16 %v399, %v398
  %v543 = vpack.c.b16 %v401, %v400
  %v544 = vpack.c.b16 %v403, %v402
  %v545 = vpack.c.b16 %v405, %v404
  %v546 = vpack.c.b16 %v407, %v406
  %v547 = vpack.c.b16 %v409, %v408
  %v548 = vpack.c.b16 %v411, %v410
  %v549 = vpack.c.b16 %v413, %v412
  %v550 = vpack.c.b16 %v415, %v414
  %v551 = vpack.c.b16 %v417, %v416
  %v552 = vpack.c.b16 %v419, %v418
  %v553 = vpack.c.b16 %v421, %v420
  %v554 = vpack.c.b16 %v423, %v422
  %v555 = vpack.c.b16 %v425, %v424
  %v556 = vpack.c.b16 %v427, %v426
  %v557 = vpack.c.b16 %v429, %v428
  %v558 = vpack.c.b16 %v431, %v430
  %v559 = vpack.c.b16 %v433, %v432
  %v560 = vpack.c.b16 %v435, %v434
  %v561 = vpack.c.b16 %v437, %v436
  %v562 = vpack.c.b16 %v439, %v438
  %v563 = vpack.c.b16 %v441, %v440
  %v564 = vpack.c.b16 %v443, %v442
  %v565 = vpack.c.b16 %v445, %v444
  %v566 = vpack.c.b16 %v447, %v446
  %v567 = vpack.c.b16 %v449, %v448
  %v568 = vpack.c.b16 %v451, %v450
  %v569 = vpack.c.b16 %v453, %v452
  %v570 = vpack.c.b16 %v455, %v454
  %v571 = vpack.c.b16 %v457, %v456
  %v572 = vpack.c.b16 %v459, %v458
  %v573 = vpack.c.b16 %v461, %v460
  %v574 = vpack.c.b16 %v463, %v462
  %v575 = vpack.c.b16 %v465, %v464
  %v576 = vpack.c.b16 %v467, %v466
  %v577 = vpack.c.b16 %v469, %v468
  %v578 = vpack.c.b16 %v471, %v470
  %v579 = vpack.c.b16 %v473, %v472
  %v580 = vpack.c.b16 %v475, %v474
  %v581 = vpack.c.b16 %v477, %v476
  %v582 = vpack.c.b16 %v479, %v478
  %v583 = vpack.c.b16 %v481, %v480
  %v584 = vpack.c.b16 %v483, %v482
  %v585 = vpack.c.b16 %v485, %v484
  %v586 = vpack.c.b16 %v487, %v486
  %v587 = vpack.c.b16 %v489, %v488
  %v588 = vpack.c.b16 %v491, %v490
  %v589 = vpack.c.b16 %v493, %v492
  %v590 = vpack.c.b16 %v495, %v494
  %v591 = vpack.c.b16 %v497, %v496
  %v592 = vpack.c.b16 %v499, %v498
  %v593 = vpack.c.b16 %v501, %v500
  %v594 = vpack.c.b16 %v503, %v502
  %v595 = vpack.c.b16 %v505, %v504
  %v596 = vpack.c.b16 %v507, %v506
  %v597 = vpack.c.b16 %v509, %v508
  %v598 = vpack.c.b16 %v511, %v510
  %v599 = vpack.c.b16 %v513, %v512
  %v600 = vpack.c.b16 %v515, %v514
  %v601 = vpack.c.b16 %v517, %v516
  %v602 = vpack.c.b16 %v519, %v518
  %v603 = vpack.c.b16 %v521, %v520
  %v604 = vpack.c.b16 %v523, %v522
  %v605 = vpack.c.b16 %v525, %v524
  %v606 = vpack.c.b16 %v527, %v526
  %v607 = vpack.c.b16 %v529, %v528
  %v608 = vpack.c.b16 %v531, %v530
  %v609 = vpack.c.b16 %v533, %v532
  %v610 = vpack.c.b16 %v535, %v534
  %v611 = vpack.c.b16 %v537, %v536
  %v612 = vpack.c.b16 %v539, %v538
  %v613 = vpack.c.b16 %v541, %v540
  %686 = vmatprep.subr.bf16.mxu0 0
  %687 = vmatpush1.bf16.msra.mxu0 %v542
  %688 = vmatprep.subr.bf16.mxu0 0
  %689 = vmatpush1.bf16.msra.mxu0 %v543
  %690 = vmatprep.subr.bf16.mxu0 0
  %691 = vmatpush1.bf16.msra.mxu0 %v544
  %692 = vmatprep.subr.bf16.mxu0 0
  %693 = vmatpush1.bf16.msra.mxu0 %v545
  %694 = vmatprep.subr.bf16.mxu0 0
  %695 = vmatpush1.bf16.msra.mxu0 %v546
  %696 = vmatprep.subr.bf16.mxu0 0
  %697 = vmatpush1.bf16.msra.mxu0 %v547
  %698 = vmatprep.subr.bf16.mxu0 0
  %699 = vmatpush1.bf16.msra.mxu0 %v548
  %700 = vmatprep.subr.bf16.mxu0 0
  %701 = vmatpush1.bf16.msra.mxu0 %v549
  %702 = vmatprep.subr.bf16.mxu0 0
  %703 = vmatpush1.bf16.msra.mxu0 %v550
  %704 = vmatprep.subr.bf16.mxu0 0
  %705 = vmatpush1.bf16.msra.mxu0 %v551
  %706 = vmatprep.subr.bf16.mxu0 0
  %707 = vmatpush1.bf16.msra.mxu0 %v552
  %708 = vmatprep.subr.bf16.mxu0 0
  %709 = vmatpush1.bf16.msra.mxu0 %v553
  %710 = vmatprep.subr.bf16.mxu0 0
  %711 = vmatpush1.bf16.msra.mxu0 %v554
  %712 = vmatprep.subr.bf16.mxu0 0
  %713 = vmatpush1.bf16.msra.mxu0 %v555
  %714 = vmatprep.subr.bf16.mxu0 0
  %715 = vmatpush1.bf16.msra.mxu0 %v556
  %716 = vmatprep.subr.bf16.mxu0 0
  %717 = vmatpush1.bf16.msra.mxu0 %v557
  %718 = vmatprep.mubr.bf16.mxu0 %v219
  %719 = vmatmul.mubr.bf16.gmra.mrb[0].mxu0 %v205
  %v720 = vpop.f32.mrb[0].mxu0
  %v721 = vadd.f32 %v178, %v720
  %v722 = vpop.f32.mrb[0].mxu0
  %v723 = vpop.f32.mrb[0].mxu0
  %v724 = vpop.f32.mrb[0].mxu0
  %725 = vdwg.mxu0
  %726 = vmatprep.subr.bf16.mxu0 0
  %727 = vmatpush1.bf16.msra.mxu0 %v558
  %728 = vmatprep.subr.bf16.mxu0 0
  %729 = vmatpush1.bf16.msra.mxu0 %v559
  %730 = vmatprep.subr.bf16.mxu0 0
  %731 = vmatpush1.bf16.msra.mxu0 %v560
  %732 = vmatprep.subr.bf16.mxu0 0
  %733 = vmatpush1.bf16.msra.mxu0 %v561
  %734 = vmatprep.subr.bf16.mxu0 0
  %735 = vmatpush1.bf16.msra.mxu0 %v562
  %736 = vmatprep.subr.bf16.mxu0 0
  %737 = vmatpush1.bf16.msra.mxu0 %v563
  %738 = vmatprep.subr.bf16.mxu0 0
  %739 = vmatpush1.bf16.msra.mxu0 %v564
  %740 = vmatprep.subr.bf16.mxu0 0
  %741 = vmatpush1.bf16.msra.mxu0 %v565
  %742 = vmatprep.subr.bf16.mxu0 0
  %743 = vmatpush1.bf16.msra.mxu0 %v566
  %744 = vmatprep.subr.bf16.mxu0 0
  %745 = vmatpush1.bf16.msra.mxu0 %v567
  %746 = vmatprep.subr.bf16.mxu0 0
  %747 = vmatpush1.bf16.msra.mxu0 %v568
  %748 = vmatprep.subr.bf16.mxu0 0
  %749 = vmatpush1.bf16.msra.mxu0 %v569
  %750 = vmatprep.subr.bf16.mxu0 0
  %751 = vmatpush1.bf16.msra.mxu0 %v570
  %752 = vmatprep.subr.bf16.mxu0 0
  %753 = vmatpush1.bf16.msra.mxu0 %v571
  %754 = vmatprep.subr.bf16.mxu0 0
  %755 = vmatpush1.bf16.msra.mxu0 %v572
  %756 = vmatprep.subr.bf16.mxu0 0
  %757 = vmatpush1.bf16.msra.mxu0 %v573
  %758 = vmatprep.mubr.bf16.mxu0 %v229
  %759 = vmatmul.mubr.bf16.gmra.mrb[0].mxu0 %v227
  %v760 = vpop.f32.mrb[0].mxu0
  %v761 = vadd.f32 %v721, %v760
  %v762 = vpop.f32.mrb[0].mxu0
  %v763 = vpop.f32.mrb[0].mxu0
  %v764 = vpop.f32.mrb[0].mxu0
  %765 = vdwg.mxu0
  %766 = vmatprep.subr.bf16.mxu0 0
  %767 = vmatpush1.bf16.msra.mxu0 %v574
  %768 = vmatprep.subr.bf16.mxu0 0
  %769 = vmatpush1.bf16.msra.mxu0 %v575
  %770 = vmatprep.subr.bf16.mxu0 0
  %771 = vmatpush1.bf16.msra.mxu0 %v576
  %772 = vmatprep.subr.bf16.mxu0 0
  %773 = vmatpush1.bf16.msra.mxu0 %v577
  %774 = vmatprep.subr.bf16.mxu0 0
  %775 = vmatpush1.bf16.msra.mxu0 %v578
  %776 = vmatprep.subr.bf16.mxu0 0
  %777 = vmatpush1.bf16.msra.mxu0 %v579
  %778 = vmatprep.subr.bf16.mxu0 0
  %779 = vmatpush1.bf16.msra.mxu0 %v580
  %780 = vmatprep.subr.bf16.mxu0 0
  %781 = vmatpush1.bf16.msra.mxu0 %v581
  %782 = vmatprep.subr.bf16.mxu0 0
  %783 = vmatpush1.bf16.msra.mxu0 %v582
  %784 = vmatprep.subr.bf16.mxu0 0
  %785 = vmatpush1.bf16.msra.mxu0 %v583
  %786 = vmatprep.subr.bf16.mxu0 0
  %787 = vmatpush1.bf16.msra.mxu0 %v584
  %788 = vmatprep.subr.bf16.mxu0 0
  %789 = vmatpush1.bf16.msra.mxu0 %v585
  %790 = vmatprep.subr.bf16.mxu0 0
  %791 = vmatpush1.bf16.msra.mxu0 %v586
  %792 = vmatprep.subr.bf16.mxu0 0
  %793 = vmatpush1.bf16.msra.mxu0 %v587
  %794 = vmatprep.subr.bf16.mxu0 0
  %795 = vmatpush1.bf16.msra.mxu0 %v588
  %796 = vmatprep.subr.bf16.mxu0 0
  %797 = vmatpush1.bf16.msra.mxu0 %v589
  %798 = vmatprep.mubr.bf16.mxu0 %v226
  %799 = vmatmul.mubr.bf16.gmra.mrb[0].mxu0 %v212
  %v800 = vpop.f32.mrb[0].mxu0
  %v801 = vadd.f32 %v761, %v800
  %v802 = vpop.f32.mrb[0].mxu0
  %v803 = vpop.f32.mrb[0].mxu0
  %v804 = vpop.f32.mrb[0].mxu0
  %805 = vdwg.mxu0
  %806 = vmatprep.subr.bf16.mxu0 0
  %807 = vmatpush1.bf16.msra.mxu0 %v590
  %808 = vmatprep.subr.bf16.mxu0 0
  %809 = vmatpush1.bf16.msra.mxu0 %v591
  %810 = vmatprep.subr.bf16.mxu0 0
  %811 = vmatpush1.bf16.msra.mxu0 %v592
  %812 = vmatprep.subr.bf16.mxu0 0
  %813 = vmatpush1.bf16.msra.mxu0 %v593
  %814 = vmatprep.subr.bf16.mxu0 0
  %815 = vmatpush1.bf16.msra.mxu0 %v594
  %816 = vmatprep.subr.bf16.mxu0 0
  %817 = vmatpush1.bf16.msra.mxu0 %v595
  %818 = vmatprep.subr.bf16.mxu0 0
  %819 = vmatpush1.bf16.msra.mxu0 %v596
  %820 = vmatprep.subr.bf16.mxu0 0
  %821 = vmatpush1.bf16.msra.mxu0 %v597
  %822 = vmatprep.subr.bf16.mxu0 0
  %823 = vmatpush1.bf16.msra.mxu0 %v598
  %824 = vmatprep.subr.bf16.mxu0 0
  %825 = vmatpush1.bf16.msra.mxu0 %v599
  %826 = vmatprep.subr.bf16.mxu0 0
  %827 = vmatpush1.bf16.msra.mxu0 %v600
  %828 = vmatprep.subr.bf16.mxu0 0
  %829 = vmatpush1.bf16.msra.mxu0 %v601
  %830 = vmatprep.subr.bf16.mxu0 0
  %831 = vmatpush1.bf16.msra.mxu0 %v602
  %832 = vmatprep.subr.bf16.mxu0 0
  %833 = vmatpush1.bf16.msra.mxu0 %v603
  %834 = vmatprep.subr.bf16.mxu0 0
  %835 = vmatpush1.bf16.msra.mxu0 %v604
  %836 = vmatprep.subr.bf16.mxu0 0
  %837 = vmatpush1.bf16.msra.mxu0 %v605
  %838 = vmatprep.mubr.bf16.mxu0 %v230
  %839 = vmatmul.mubr.bf16.gmra.mrb[0].mxu0 %v228
  %v840 = vpop.f32.mrb[0].mxu0
  %v841 = vadd.f32 %v801, %v840
  %v842 = vpop.f32.mrb[0].mxu0
  %v843 = vpop.f32.mrb[0].mxu0
  %v844 = vpop.f32.mrb[0].mxu0
  %845 = vdwg.mxu0
  %846 = vmatprep.subr.bf16.mxu0 0
  %847 = vmatpush1.bf16.msra.mxu0 %v606
  %848 = vmatprep.subr.bf16.mxu0 0
  %849 = vmatpush1.bf16.msra.mxu0 %v607
  %850 = vmatprep.subr.bf16.mxu0 0
  %851 = vmatpush1.bf16.msra.mxu0 %v608
  %852 = vmatprep.subr.bf16.mxu0 0
  %853 = vmatpush1.bf16.msra.mxu0 %v609
  %854 = vmatprep.subr.bf16.mxu0 0
  %855 = vmatpush1.bf16.msra.mxu0 %v610
  %856 = vmatprep.subr.bf16.mxu0 0
  %857 = vmatpush1.bf16.msra.mxu0 %v611
  %858 = vmatprep.subr.bf16.mxu0 0
  %859 = vmatpush1.bf16.msra.mxu0 %v612
  %860 = vmatprep.subr.bf16.mxu0 0
  %861 = vmatpush1.bf16.msra.mxu0 %v613
  %862 = vmatprep.subr.bf16.mxu0 0
  %863 = vmatpush1.bf16.msra.mxu0 0
  %864 = vmatprep.subr.bf16.mxu0 0
  %865 = vmatpush1.bf16.msra.mxu0 0
  %866 = vmatprep.subr.bf16.mxu0 0
  %867 = vmatpush1.bf16.msra.mxu0 0
  %868 = vmatprep.subr.bf16.mxu0 0
  %869 = vmatpush1.bf16.msra.mxu0 0
  %870 = vmatprep.subr.bf16.mxu0 0
  %871 = vmatpush1.bf16.msra.mxu0 0
  %872 = vmatprep.subr.bf16.mxu0 0
  %873 = vmatpush1.bf16.msra.mxu0 0
  %874 = vmatprep.subr.bf16.mxu0 0
  %875 = vmatpush1.bf16.msra.mxu0 0
  %876 = vmatprep.subr.bf16.mxu0 0
  %877 = vmatpush1.bf16.msra.mxu0 0
  %878 = vmatprep.mubr.bf16.mxu0 0
  %879 = vmatmul.mubr.bf16.gmra.mrb[0].mxu0 %v244
  %v880 = vpop.f32.mrb[0].mxu0
  %v881 = vadd.f32 %v841, %v880
  %v882 = vpop.f32.mrb[0].mxu0
  %v883 = vpop.f32.mrb[0].mxu0
  %v884 = vpop.f32.mrb[0].mxu0
  %885 = vdwg.mxu0
  %v886 = vmax.f32 %v881, 0.0
  %v887 = vpack.c.bf16 %v886, %v886
  %v888 = vld [vmem:[%s3] sm:$0xff]
  %v889 = vld [vmem:[%s3 + $0x8] sm:$0xff]
  %v890 = vld [vmem:[%s3 + $0x10] sm:$0xff]
  %v891 = vld [vmem:[%s3 + $0x18] sm:$0xff]
  %v892 = vld [vmem:[%s3 + $0x20] sm:$0xff]
  %v893 = vld [vmem:[%s3 + $0x28] sm:$0xff]
  %v894 = vld [vmem:[%s3 + $0x30] sm:$0xff]
  %v895 = vld [vmem:[%s3 + $0x38] sm:$0xff]
  %v896 = vld [vmem:[%s3 + $0x40] sm:$0xff]
  %v897 = vld [vmem:[%s3 + $0x48] sm:$0xff]
  %v898 = vld [vmem:[%s3 + $0x50] sm:$0xff]
  %v899 = vld [vmem:[%s3 + $0x58] sm:$0xff]
  %v900 = vld [vmem:[%s3 + $0x60] sm:$0xff]
  %v901 = vld [vmem:[%s3 + $0x68] sm:$0xff]
  %v902 = vld [vmem:[%s3 + $0x70] sm:$0xff]
  %v903 = vld [vmem:[%s3 + $0x78] sm:$0xff]
  %v904 = vld [vmem:[%s3 + $0x80] sm:$0xff]
  %v905 = vld [vmem:[%s3 + $0x88] sm:$0xff]
  %v906 = vld [vmem:[%s3 + $0x90] sm:$0xff]
  %v907 = vld [vmem:[%s3 + $0x98] sm:$0xff]
  %v908 = vld [vmem:[%s3 + $0xa0] sm:$0xff]
  %v909 = vld [vmem:[%s3 + $0xa8] sm:$0xff]
  %v910 = vld [vmem:[%s3 + $0xb0] sm:$0xff]
  %v911 = vld [vmem:[%s3 + $0xb8] sm:$0xff]
  %v912 = vld [vmem:[%s3 + $0xc0] sm:$0xff]
  %v913 = vld [vmem:[%s3 + $0xc8] sm:$0xff]
  %v914 = vld [vmem:[%s3 + $0xd0] sm:$0xff]
  %v915 = vld [vmem:[%s3 + $0xd8] sm:$0xff]
  %v916 = vld [vmem:[%s3 + $0xe0] sm:$0xff]
  %v917 = vld [vmem:[%s3 + $0xe8] sm:$0xff]
  %v918 = vld [vmem:[%s3 + $0xf0] sm:$0xff]
  %v919 = vld [vmem:[%s3 + $0xf8] sm:$0xff]
  %v920 = vld [vmem:[%s4] sm:$0xf]
  %v922 = vlaneseq
  %v923 = vshrl.u32 %v922, 7
  %v924 = vsub.s32 0, %v923
  %v925 = vrot.slane %v920, %v924
  %v926 = vlaneseq
  %v927 = vshrl.u32 %v926, 7
  %v928 = vsub.s32 1, %v927
  %v929 = vrot.slane %v920, %v928
  %v930 = vlaneseq
  %v931 = vshrl.u32 %v930, 7
  %v932 = vsub.s32 2, %v931
  %v933 = vrot.slane %v920, %v932
  %v934 = vlaneseq
  %v935 = vshrl.u32 %v934, 7
  %v936 = vsub.s32 3, %v935
  %v937 = vrot.slane %v920, %v936
  %v974 = vunpack.c.l.b16 %v888
  %v975 = vunpack.c.h.b16 %v888
  %v976 = vunpack.c.l.b16 %v889
  %v977 = vunpack.c.h.b16 %v889
  %v978 = vunpack.c.l.b16 %v890
  %v979 = vunpack.c.h.b16 %v890
  %v980 = vunpack.c.l.b16 %v891
  %v981 = vunpack.c.h.b16 %v891
  %v982 = vunpack.c.l.b16 %v892
  %v983 = vunpack.c.h.b16 %v892
  %v984 = vunpack.c.l.b16 %v893
  %v985 = vunpack.c.h.b16 %v893
  %v986 = vunpack.c.l.b16 %v894
  %v987 = vunpack.c.h.b16 %v894
  %v988 = vunpack.c.l.b16 %v895
  %v989 = vunpack.c.h.b16 %v895
  %v990 = vunpack.c.l.b16 %v896
  %v991 = vunpack.c.h.b16 %v896
  %v992 = vunpack.c.l.b16 %v897
  %v993 = vunpack.c.h.b16 %v897
  %v994 = vunpack.c.l.b16 %v898
  %v995 = vunpack.c.h.b16 %v898
  %v996 = vunpack.c.l.b16 %v899
  %v997 = vunpack.c.h.b16 %v899
  %v998 = vunpack.c.l.b16 %v900
  %v999 = vunpack.c.h.b16 %v900
  %v1000 = vunpack.c.l.b16 %v901
  %v1001 = vunpack.c.h.b16 %v901
  %v1002 = vunpack.c.l.b16 %v902
  %v1003 = vunpack.c.h.b16 %v902
  %v1004 = vunpack.c.l.b16 %v903
  %v1005 = vunpack.c.h.b16 %v903
  %v1006 = vunpack.c.l.b16 %v904
  %v1007 = vunpack.c.h.b16 %v904
  %v1008 = vunpack.c.l.b16 %v905
  %v1009 = vunpack.c.h.b16 %v905
  %v1010 = vunpack.c.l.b16 %v906
  %v1011 = vunpack.c.h.b16 %v906
  %v1012 = vunpack.c.l.b16 %v907
  %v1013 = vunpack.c.h.b16 %v907
  %v1014 = vunpack.c.l.b16 %v908
  %v1015 = vunpack.c.h.b16 %v908
  %v1016 = vunpack.c.l.b16 %v909
  %v1017 = vunpack.c.h.b16 %v909
  %v1018 = vunpack.c.l.b16 %v910
  %v1019 = vunpack.c.h.b16 %v910
  %v1020 = vunpack.c.l.b16 %v911
  %v1021 = vunpack.c.h.b16 %v911
  %v1022 = vunpack.c.l.b16 %v912
  %v1023 = vunpack.c.h.b16 %v912
  %v1024 = vunpack.c.l.b16 %v913
  %v1025 = vunpack.c.h.b16 %v913
  %v1026 = vunpack.c.l.b16 %v914
  %v1027 = vunpack.c.h.b16 %v914
  %v1028 = vunpack.c.l.b16 %v915
  %v1029 = vunpack.c.h.b16 %v915
  %v1030 = vunpack.c.l.b16 %v916
  %v1031 = vunpack.c.h.b16 %v916
  %v1032 = vunpack.c.l.b16 %v917
  %v1033 = vunpack.c.h.b16 %v917
  %v1034 = vunpack.c.l.b16 %v918
  %v1035 = vunpack.c.h.b16 %v918
  %v1036 = vunpack.c.l.b16 %v919
  %v1037 = vunpack.c.h.b16 %v919
  %v1038 = vpack.c.b16 %v978, %v974
  %v1039 = vpack.c.b16 %v979, %v975
  %v1040 = vpack.c.b16 %v980, %v976
  %v1041 = vpack.c.b16 %v981, %v977
  %v1042 = vpack.c.b16 %v986, %v982
  %v1043 = vpack.c.b16 %v987, %v983
  %v1044 = vpack.c.b16 %v988, %v984
  %v1045 = vpack.c.b16 %v989, %v985
  %v1046 = vpack.c.b16 %v994, %v990
  %v1047 = vpack.c.b16 %v995, %v991
  %v1048 = vpack.c.b16 %v996, %v992
  %v1049 = vpack.c.b16 %v997, %v993
  %v1050 = vpack.c.b16 %v1002, %v998
  %v1051 = vpack.c.b16 %v1003, %v999
  %v1052 = vpack.c.b16 %v1004, %v1000
  %v1053 = vpack.c.b16 %v1005, %v1001
  %v1054 = vpack.c.b16 %v1010, %v1006
  %v1055 = vpack.c.b16 %v1011, %v1007
  %v1056 = vpack.c.b16 %v1012, %v1008
  %v1057 = vpack.c.b16 %v1013, %v1009
  %v1058 = vpack.c.b16 %v1018, %v1014
  %v1059 = vpack.c.b16 %v1019, %v1015
  %v1060 = vpack.c.b16 %v1020, %v1016
  %v1061 = vpack.c.b16 %v1021, %v1017
  %v1062 = vpack.c.b16 %v1026, %v1022
  %v1063 = vpack.c.b16 %v1027, %v1023
  %v1064 = vpack.c.b16 %v1028, %v1024
  %v1065 = vpack.c.b16 %v1029, %v1025
  %v1066 = vpack.c.b16 %v1034, %v1030
  %v1067 = vpack.c.b16 %v1035, %v1031
  %v1068 = vpack.c.b16 %v1036, %v1032
  %v1069 = vpack.c.b16 %v1037, %v1033
  %1102 = vmatprep.subr.bf16.mxu0 %v1039
  %1103 = vmatpush1.bf16.msra.mxu0 %v1038
  %1104 = vmatprep.subr.bf16.mxu0 %v1043
  %1105 = vmatpush1.bf16.msra.mxu0 %v1042
  %1106 = vmatprep.subr.bf16.mxu0 %v1047
  %1107 = vmatpush1.bf16.msra.mxu0 %v1046
  %1108 = vmatprep.subr.bf16.mxu0 %v1051
  %1109 = vmatpush1.bf16.msra.mxu0 %v1050
  %1110 = vmatprep.subr.bf16.mxu0 %v1055
  %1111 = vmatpush1.bf16.msra.mxu0 %v1054
  %1112 = vmatprep.subr.bf16.mxu0 %v1059
  %1113 = vmatpush1.bf16.msra.mxu0 %v1058
  %1114 = vmatprep.subr.bf16.mxu0 %v1063
  %1115 = vmatpush1.bf16.msra.mxu0 %v1062
  %1116 = vmatprep.subr.bf16.mxu0 %v1067
  %1117 = vmatpush1.bf16.msra.mxu0 %v1066
  %1118 = vmatprep.subr.bf16.mxu0 0
  %1119 = vmatpush1.bf16.msra.mxu0 0
  %1120 = vmatprep.subr.bf16.mxu0 0
  %1121 = vmatpush1.bf16.msra.mxu0 0
  %1122 = vmatprep.subr.bf16.mxu0 0
  %1123 = vmatpush1.bf16.msra.mxu0 0
  %1124 = vmatprep.subr.bf16.mxu0 0
  %1125 = vmatpush1.bf16.msra.mxu0 0
  %1126 = vmatprep.subr.bf16.mxu0 0
  %1127 = vmatpush1.bf16.msra.mxu0 0
  %1128 = vmatprep.subr.bf16.mxu0 0
  %1129 = vmatpush1.bf16.msra.mxu0 0
  %1130 = vmatprep.subr.bf16.mxu0 0
  %1131 = vmatpush1.bf16.msra.mxu0 0
  %1132 = vmatprep.subr.bf16.mxu0 0
  %1133 = vmatpush1.bf16.msra.mxu0 0
  %1134 = vmatprep.mubr.bf16.mxu0 0
  %1135 = vmatmul.mubr.bf16.gmra.mrb[0].mxu0 %v887
  %v1136 = vpop.f32.mrb[0].mxu0
  %v1137 = vadd.f32 %v925, %v1136
  %v1138 = vpop.f32.mrb[0].mxu0
  %v1139 = vadd.f32 %v929, %v1138
  %v1140 = vpop.f32.mrb[0].mxu0
  %v1141 = vpop.f32.mrb[0].mxu0
  %1142 = vdwg.mxu0
  %1143 = vmatprep.subr.bf16.mxu0 %v1041
  %1144 = vmatpush1.bf16.msra.mxu0 %v1040
  %1145 = vmatprep.subr.bf16.mxu0 %v1045
  %1146 = vmatpush1.bf16.msra.mxu0 %v1044
  %1147 = vmatprep.subr.bf16.mxu0 %v1049
  %1148 = vmatpush1.bf16.msra.mxu0 %v1048
  %1149 = vmatprep.subr.bf16.mxu0 %v1053
  %1150 = vmatpush1.bf16.msra.mxu0 %v1052
  %1151 = vmatprep.subr.bf16.mxu0 %v1057
  %1152 = vmatpush1.bf16.msra.mxu0 %v1056
  %1153 = vmatprep.subr.bf16.mxu0 %v1061
  %1154 = vmatpush1.bf16.msra.mxu0 %v1060
  %1155 = vmatprep.subr.bf16.mxu0 %v1065
  %1156 = vmatpush1.bf16.msra.mxu0 %v1064
  %1157 = vmatprep.subr.bf16.mxu0 %v1069
  %1158 = vmatpush1.bf16.msra.mxu0 %v1068
  %1159 = vmatprep.subr.bf16.mxu0 0
  %1160 = vmatpush1.bf16.msra.mxu0 0
  %1161 = vmatprep.subr.bf16.mxu0 0
  %1162 = vmatpush1.bf16.msra.mxu0 0
  %1163 = vmatprep.subr.bf16.mxu0 0
  %1164 = vmatpush1.bf16.msra.mxu0 0
  %1165 = vmatprep.subr.bf16.mxu0 0
  %1166 = vmatpush1.bf16.msra.mxu0 0
  %1167 = vmatprep.subr.bf16.mxu0 0
  %1168 = vmatpush1.bf16.msra.mxu0 0
  %1169 = vmatprep.subr.bf16.mxu0 0
  %1170 = vmatpush1.bf16.msra.mxu0 0
  %1171 = vmatprep.subr.bf16.mxu0 0
  %1172 = vmatpush1.bf16.msra.mxu0 0
  %1173 = vmatprep.subr.bf16.mxu0 0
  %1174 = vmatpush1.bf16.msra.mxu0 0
  %1175 = vmatprep.mubr.bf16.mxu0 0
  %1176 = vmatmul.mubr.bf16.gmra.mrb[0].mxu0 %v887
  %v1177 = vpop.f32.mrb[0].mxu0
  %v1178 = vadd.f32 %v933, %v1177
  %v1179 = vpop.f32.mrb[0].mxu0
  %v1180 = vadd.f32 %v937, %v1179
  %v1181 = vpop.f32.mrb[0].mxu0
  %v1182 = vpop.f32.mrb[0].mxu0
  %1183 = vdwg.mxu0
  %v1184 = vmax.f32 %v1137, 0.0
  %v1185 = vmax.f32 %v1139, 0.0
  %v1186 = vmax.f32 %v1178, 0.0
  %v1187 = vmax.f32 %v1180, 0.0
  %v1188 = vpack.c.bf16 %v1184, %v1184
  %v1189 = vpack.c.bf16 %v1185, %v1185
  %v1190 = vpack.c.bf16 %v1186, %v1186
  %v1191 = vpack.c.bf16 %v1187, %v1187
  %v1192 = vld [vmem:[%s5] sm:$0xf]
  %v1193 = vld [vmem:[%s5 + $0x4] sm:$0xf]
  %v1194 = vld [vmem:[%s5 + $0x8] sm:$0xf]
  %v1195 = vld [vmem:[%s5 + $0xc] sm:$0xf]
  %v1196 = vld [vmem:[%s5 + $0x10] sm:$0xf]
  %v1197 = vld [vmem:[%s5 + $0x14] sm:$0xf]
  %v1198 = vld [vmem:[%s5 + $0x18] sm:$0xf]
  %v1199 = vld [vmem:[%s5 + $0x1c] sm:$0xf]
  %v1200 = vld [vmem:[%s5 + $0x20] sm:$0xf]
  %v1201 = vld [vmem:[%s5 + $0x24] sm:$0xf]
  %v1202 = vld [vmem:[%s5 + $0x28] sm:$0xf]
  %v1203 = vld [vmem:[%s5 + $0x2c] sm:$0xf]
  %v1204 = vld [vmem:[%s5 + $0x30] sm:$0xf]
  %v1205 = vld [vmem:[%s5 + $0x34] sm:$0xf]
  %v1206 = vld [vmem:[%s5 + $0x38] sm:$0xf]
  %v1207 = vld [vmem:[%s5 + $0x3c] sm:$0xf]
  %v1208 = vld [vmem:[%s5 + $0x40] sm:$0xf]
  %v1209 = vld [vmem:[%s5 + $0x44] sm:$0xf]
  %v1210 = vld [vmem:[%s5 + $0x48] sm:$0xf]
  %v1211 = vld [vmem:[%s5 + $0x4c] sm:$0xf]
  %v1212 = vld [vmem:[%s5 + $0x50] sm:$0xf]
  %v1213 = vld [vmem:[%s5 + $0x54] sm:$0xf]
  %v1214 = vld [vmem:[%s5 + $0x58] sm:$0xf]
  %v1215 = vld [vmem:[%s5 + $0x5c] sm:$0xf]
  %v1216 = vld [vmem:[%s5 + $0x60] sm:$0xf]
  %v1217 = vld [vmem:[%s5 + $0x64] sm:$0xf]
  %v1218 = vld [vmem:[%s5 + $0x68] sm:$0xf]
  %v1219 = vld [vmem:[%s5 + $0x6c] sm:$0xf]
  %v1220 = vld [vmem:[%s5 + $0x70] sm:$0xf]
  %v1221 = vld [vmem:[%s5 + $0x74] sm:$0xf]
  %v1222 = vld [vmem:[%s5 + $0x78] sm:$0xf]
  %v1223 = vld [vmem:[%s5 + $0x7c] sm:$0xf]
  %v1224 = vld [vmem:[%s5 + $0x80] sm:$0xf]
  %v1225 = vld [vmem:[%s5 + $0x84] sm:$0xf]
  %v1226 = vld [vmem:[%s5 + $0x88] sm:$0xf]
  %v1227 = vld [vmem:[%s5 + $0x8c] sm:$0xf]
  %v1228 = vld [vmem:[%s5 + $0x90] sm:$0xf]
  %v1229 = vld [vmem:[%s5 + $0x94] sm:$0xf]
  %v1230 = vld [vmem:[%s5 + $0x98] sm:$0xf]
  %v1231 = vld [vmem:[%s5 + $0x9c] sm:$0xf]
  %v1232 = vld [vmem:[%s5 + $0xa0] sm:$0xf]
  %v1233 = vld [vmem:[%s5 + $0xa4] sm:$0xf]
  %v1234 = vld [vmem:[%s5 + $0xa8] sm:$0xf]
  %v1235 = vld [vmem:[%s5 + $0xac] sm:$0xf]
  %v1236 = vld [vmem:[%s5 + $0xb0] sm:$0xf]
  %v1237 = vld [vmem:[%s5 + $0xb4] sm:$0xf]
  %v1238 = vld [vmem:[%s5 + $0xb8] sm:$0xf]
  %v1239 = vld [vmem:[%s5 + $0xbc] sm:$0xf]
  %v1240 = vld [vmem:[%s5 + $0xc0] sm:$0xf]
  %v1241 = vld [vmem:[%s5 + $0xc4] sm:$0xf]
  %v1242 = vld [vmem:[%s5 + $0xc8] sm:$0xf]
  %v1243 = vld [vmem:[%s5 + $0xcc] sm:$0xf]
  %v1244 = vld [vmem:[%s5 + $0xd0] sm:$0xf]
  %v1245 = vld [vmem:[%s5 + $0xd4] sm:$0xf]
  %v1246 = vld [vmem:[%s5 + $0xd8] sm:$0xf]
  %v1247 = vld [vmem:[%s5 + $0xdc] sm:$0xf]
  %v1248 = vld [vmem:[%s5 + $0xe0] sm:$0xf]
  %v1249 = vld [vmem:[%s5 + $0xe4] sm:$0xf]
  %v1250 = vld [vmem:[%s5 + $0xe8] sm:$0xf]
  %v1251 = vld [vmem:[%s5 + $0xec] sm:$0xf]
  %v1252 = vld [vmem:[%s5 + $0xf0] sm:$0xf]
  %v1253 = vld [vmem:[%s5 + $0xf4] sm:$0xf]
  %v1254 = vld [vmem:[%s5 + $0xf8] sm:$0xf]
  %v1255 = vld [vmem:[%s5 + $0xfc] sm:$0xf]
  %v1256 = vld [vmem:[%s6] sm:$0x1]
  %v1258 = vlaneseq
  %v1259 = vshrl.u32 %v1258, 7
  %v1260 = vsub.s32 0, %v1259
  %v1261 = vrot.slane %v1256, %v1260
  %v1327 = vunpack.c.l.b16 %v1192
  %v1328 = vunpack.c.l.b16 %v1193
  %v1329 = vunpack.c.l.b16 %v1194
  %v1330 = vunpack.c.l.b16 %v1195
  %v1331 = vunpack.c.l.b16 %v1196
  %v1332 = vunpack.c.l.b16 %v1197
  %v1333 = vunpack.c.l.b16 %v1198
  %v1334 = vunpack.c.l.b16 %v1199
  %v1335 = vunpack.c.l.b16 %v1200
  %v1336 = vunpack.c.l.b16 %v1201
  %v1337 = vunpack.c.l.b16 %v1202
  %v1338 = vunpack.c.l.b16 %v1203
  %v1339 = vunpack.c.l.b16 %v1204
  %v1340 = vunpack.c.l.b16 %v1205
  %v1341 = vunpack.c.l.b16 %v1206
  %v1342 = vunpack.c.l.b16 %v1207
  %v1343 = vunpack.c.l.b16 %v1208
  %v1344 = vunpack.c.l.b16 %v1209
  %v1345 = vunpack.c.l.b16 %v1210
  %v1346 = vunpack.c.l.b16 %v1211
  %v1347 = vunpack.c.l.b16 %v1212
  %v1348 = vunpack.c.l.b16 %v1213
  %v1349 = vunpack.c.l.b16 %v1214
  %v1350 = vunpack.c.l.b16 %v1215
  %v1351 = vunpack.c.l.b16 %v1216
  %v1352 = vunpack.c.l.b16 %v1217
  %v1353 = vunpack.c.l.b16 %v1218
  %v1354 = vunpack.c.l.b16 %v1219
  %v1355 = vunpack.c.l.b16 %v1220
  %v1356 = vunpack.c.l.b16 %v1221
  %v1357 = vunpack.c.l.b16 %v1222
  %v1358 = vunpack.c.l.b16 %v1223
  %v1359 = vunpack.c.l.b16 %v1224
  %v1360 = vunpack.c.l.b16 %v1225
  %v1361 = vunpack.c.l.b16 %v1226
  %v1362 = vunpack.c.l.b16 %v1227
  %v1363 = vunpack.c.l.b16 %v1228
  %v1364 = vunpack.c.l.b16 %v1229
  %v1365 = vunpack.c.l.b16 %v1230
  %v1366 = vunpack.c.l.b16 %v1231
  %v1367 = vunpack.c.l.b16 %v1232
  %v1368 = vunpack.c.l.b16 %v1233
  %v1369 = vunpack.c.l.b16 %v1234
  %v1370 = vunpack.c.l.b16 %v1235
  %v1371 = vunpack.c.l.b16 %v1236
  %v1372 = vunpack.c.l.b16 %v1237
  %v1373 = vunpack.c.l.b16 %v1238
  %v1374 = vunpack.c.l.b16 %v1239
  %v1375 = vunpack.c.l.b16 %v1240
  %v1376 = vunpack.c.l.b16 %v1241
  %v1377 = vunpack.c.l.b16 %v1242
  %v1378 = vunpack.c.l.b16 %v1243
  %v1379 = vunpack.c.l.b16 %v1244
  %v1380 = vunpack.c.l.b16 %v1245
  %v1381 = vunpack.c.l.b16 %v1246
  %v1382 = vunpack.c.l.b16 %v1247
  %v1383 = vunpack.c.l.b16 %v1248
  %v1384 = vunpack.c.l.b16 %v1249
  %v1385 = vunpack.c.l.b16 %v1250
  %v1386 = vunpack.c.l.b16 %v1251
  %v1387 = vunpack.c.l.b16 %v1252
  %v1388 = vunpack.c.l.b16 %v1253
  %v1389 = vunpack.c.l.b16 %v1254
  %v1390 = vunpack.c.l.b16 %v1255
  %v1391 = vpack.c.b16 %v1328, %v1327
  %v1392 = vpack.c.b16 %v1330, %v1329
  %v1393 = vpack.c.b16 %v1332, %v1331
  %v1394 = vpack.c.b16 %v1334, %v1333
  %v1395 = vpack.c.b16 %v1336, %v1335
  %v1396 = vpack.c.b16 %v1338, %v1337
  %v1397 = vpack.c.b16 %v1340, %v1339
  %v1398 = vpack.c.b16 %v1342, %v1341
  %v1399 = vpack.c.b16 %v1344, %v1343
  %v1400 = vpack.c.b16 %v1346, %v1345
  %v1401 = vpack.c.b16 %v1348, %v1347
  %v1402 = vpack.c.b16 %v1350, %v1349
  %v1403 = vpack.c.b16 %v1352, %v1351
  %v1404 = vpack.c.b16 %v1354, %v1353
  %v1405 = vpack.c.b16 %v1356, %v1355
  %v1406 = vpack.c.b16 %v1358, %v1357
  %v1407 = vpack.c.b16 %v1360, %v1359
  %v1408 = vpack.c.b16 %v1362, %v1361
  %v1409 = vpack.c.b16 %v1364, %v1363
  %v1410 = vpack.c.b16 %v1366, %v1365
  %v1411 = vpack.c.b16 %v1368, %v1367
  %v1412 = vpack.c.b16 %v1370, %v1369
  %v1413 = vpack.c.b16 %v1372, %v1371
  %v1414 = vpack.c.b16 %v1374, %v1373
  %v1415 = vpack.c.b16 %v1376, %v1375
  %v1416 = vpack.c.b16 %v1378, %v1377
  %v1417 = vpack.c.b16 %v1380, %v1379
  %v1418 = vpack.c.b16 %v1382, %v1381
  %v1419 = vpack.c.b16 %v1384, %v1383
  %v1420 = vpack.c.b16 %v1386, %v1385
  %v1421 = vpack.c.b16 %v1388, %v1387
  %v1422 = vpack.c.b16 %v1390, %v1389
  %1455 = vmatprep.subr.bf16.mxu0 0
  %1456 = vmatpush1.bf16.msra.mxu0 %v1391
  %1457 = vmatprep.subr.bf16.mxu0 0
  %1458 = vmatpush1.bf16.msra.mxu0 %v1392
  %1459 = vmatprep.subr.bf16.mxu0 0
  %1460 = vmatpush1.bf16.msra.mxu0 %v1393
  %1461 = vmatprep.subr.bf16.mxu0 0
  %1462 = vmatpush1.bf16.msra.mxu0 %v1394
  %1463 = vmatprep.subr.bf16.mxu0 0
  %1464 = vmatpush1.bf16.msra.mxu0 %v1395
  %1465 = vmatprep.subr.bf16.mxu0 0
  %1466 = vmatpush1.bf16.msra.mxu0 %v1396
  %1467 = vmatprep.subr.bf16.mxu0 0
  %1468 = vmatpush1.bf16.msra.mxu0 %v1397
  %1469 = vmatprep.subr.bf16.mxu0 0
  %1470 = vmatpush1.bf16.msra.mxu0 %v1398
  %1471 = vmatprep.subr.bf16.mxu0 0
  %1472 = vmatpush1.bf16.msra.mxu0 %v1399
  %1473 = vmatprep.subr.bf16.mxu0 0
  %1474 = vmatpush1.bf16.msra.mxu0 %v1400
  %1475 = vmatprep.subr.bf16.mxu0 0
  %1476 = vmatpush1.bf16.msra.mxu0 %v1401
  %1477 = vmatprep.subr.bf16.mxu0 0
  %1478 = vmatpush1.bf16.msra.mxu0 %v1402
  %1479 = vmatprep.subr.bf16.mxu0 0
  %1480 = vmatpush1.bf16.msra.mxu0 %v1403
  %1481 = vmatprep.subr.bf16.mxu0 0
  %1482 = vmatpush1.bf16.msra.mxu0 %v1404
  %1483 = vmatprep.subr.bf16.mxu0 0
  %1484 = vmatpush1.bf16.msra.mxu0 %v1405
  %1485 = vmatprep.subr.bf16.mxu0 0
  %1486 = vmatpush1.bf16.msra.mxu0 %v1406
  %1487 = vmatprep.mubr.bf16.mxu0 %v1189
  %1488 = vmatmul.mubr.bf16.gmra.mrb[0].mxu0 %v1188
  %v1489 = vpop.f32.mrb[0].mxu0
  %v1490 = vadd.f32 %v1261, %v1489
  %v1491 = vpop.f32.mrb[0].mxu0
  %v1492 = vpop.f32.mrb[0].mxu0
  %v1493 = vpop.f32.mrb[0].mxu0
  %1494 = vdwg.mxu0
  %1495 = vmatprep.subr.bf16.mxu0 0
  %1496 = vmatpush1.bf16.msra.mxu0 %v1407
  %1497 = vmatprep.subr.bf16.mxu0 0
  %1498 = vmatpush1.bf16.msra.mxu0 %v1408
  %1499 = vmatprep.subr.bf16.mxu0 0
  %1500 = vmatpush1.bf16.msra.mxu0 %v1409
  %1501 = vmatprep.subr.bf16.mxu0 0
  %1502 = vmatpush1.bf16.msra.mxu0 %v1410
  %1503 = vmatprep.subr.bf16.mxu0 0
  %1504 = vmatpush1.bf16.msra.mxu0 %v1411
  %1505 = vmatprep.subr.bf16.mxu0 0
  %1506 = vmatpush1.bf16.msra.mxu0 %v1412
  %1507 = vmatprep.subr.bf16.mxu0 0
  %1508 = vmatpush1.bf16.msra.mxu0 %v1413
  %1509 = vmatprep.subr.bf16.mxu0 0
  %1510 = vmatpush1.bf16.msra.mxu0 %v1414
  %1511 = vmatprep.subr.bf16.mxu0 0
  %1512 = vmatpush1.bf16.msra.mxu0 %v1415
  %1513 = vmatprep.subr.bf16.mxu0 0
  %1514 = vmatpush1.bf16.msra.mxu0 %v1416
  %1515 = vmatprep.subr.bf16.mxu0 0
  %1516 = vmatpush1.bf16.msra.mxu0 %v1417
  %1517 = vmatprep.subr.bf16.mxu0 0
  %1518 = vmatpush1.bf16.msra.mxu0 %v1418
  %1519 = vmatprep.subr.bf16.mxu0 0
  %1520 = vmatpush1.bf16.msra.mxu0 %v1419
  %1521 = vmatprep.subr.bf16.mxu0 0
  %1522 = vmatpush1.bf16.msra.mxu0 %v1420
  %1523 = vmatprep.subr.bf16.mxu0 0
  %1524 = vmatpush1.bf16.msra.mxu0 %v1421
  %1525 = vmatprep.subr.bf16.mxu0 0
  %1526 = vmatpush1.bf16.msra.mxu0 %v1422
  %1527 = vmatprep.mubr.bf16.mxu0 %v1191
  %1528 = vmatmul.mubr.bf16.gmra.mrb[0].mxu0 %v1190
  %v1529 = vpop.f32.mrb[0].mxu0
  %v1530 = vadd.f32 %v1490, %v1529
  %v1531 = vpop.f32.mrb[0].mxu0
  %v1532 = vpop.f32.mrb[0].mxu0
  %v1533 = vpop.f32.mrb[0].mxu0
  %1534 = vdwg.mxu0
  %1535 = vst [vmem:[%s7] sm:$0x3] %v1530
  // Predicated region
  $region30: #{actor_critic_forward.5} parent=0 // pred_check
    _
  $region31: #{actor_critic_forward.5} parent=0 // pred_check_branch
    %1537 = sbr.rel (0) target = $region33
  $region32: #{actor_critic_forward.5} parent=0 // pred_region
    _
  $region33: #{actor_critic_forward.5} parent=0 // pred_fallthru
    _
  // Predicated region
  $region34: #{actor_critic_forward.5} parent=0 // pred_check
    _
  $region35: #{actor_critic_forward.5} parent=0 // pred_check_branch
    %1539 = sbr.rel (0) target = $region37
  $region36: #{actor_critic_forward.5} parent=0 // pred_region
    _
  $region37: #{actor_critic_forward.5} parent=0 // pred_fallthru
    _

</llo_original>
